<compile_context>
chip_gen: v7x
topology: tpu7x:2x2x1
jax: 0.10.0
libtpu: 0.0.40
codegen_flags: <defaults>
</compile_context>

<pallas_src>
import functools

import jax
import jax.numpy as jnp
from jax import lax
from jax.experimental import pallas as pl
from jax.experimental.pallas import tpu as pltpu


# ----------------------------------------------------------------------------
# Kernel: VPU layer-1 + 4x MXU (conv1x1 [BN-scale folded] -> +bias -> ReLU)
# chain + pn masking. Grid: (batch, point-tiles); one (C, TN) slab per step.
# ----------------------------------------------------------------------------
def _feature_extractor_kernel(
    pn_ref,                                   # scalar-prefetch: (B,) int32
    x_ref,                                    # (1, 3, TN) f32   (NCW slab)
    w1_ref, w2_ref, w3_ref, w4_ref, w5_ref,   # (Cout, Cin) bf16, BN-scale folded
    b1_ref, b2_ref, b3_ref, b4_ref, b5_ref,   # (Cout, 1) f32 folded-BN bias
    out_ref,                                  # (1, emb, TN) out_dtype
    *, tile_n,
):
    b = pl.program_id(0)
    t = pl.program_id(1)
    tile_start = t * tile_n
    n_valid = pn_ref[b]

    # Fully-masked tile: skip all compute, just store zeros.
    @pl.when(tile_start >= n_valid)
    def _():
        out_ref[...] = jnp.zeros_like(out_ref)

    @pl.when(tile_start < n_valid)
    def _():
        x = x_ref[0]                                    # (3, TN) f32

        # ---- Layer 1 on the VPU (Cin=3): three broadcast FMAs, f32. ----
        w1 = w1_ref[...].astype(jnp.float32)            # (64, 3)
        y1 = (w1[:, 0:1] * x[0:1, :]
              + w1[:, 1:2] * x[1:2, :]
              + w1[:, 2:3] * x[2:3, :])                 # (64, TN) f32
        h = jnp.maximum(y1 + b1_ref[...], 0.0).astype(jnp.bfloat16)

        # ---- Layers 2-5 on the MXU: bf16 operands, f32 accumulation. ----
        def mxu_layer(h_bf16, w_ref, bias_ref):
            y = jnp.dot(w_ref[...], h_bf16, preferred_element_type=jnp.float32)
            return jnp.maximum(y + bias_ref[...], 0.0)  # folded-BN bias + ReLU

        h = mxu_layer(h, w2_ref, b2_ref).astype(jnp.bfloat16)   # (64,  TN)
        h = mxu_layer(h, w3_ref, b3_ref).astype(jnp.bfloat16)   # (64,  TN)
        h = mxu_layer(h, w4_ref, b4_ref).astype(jnp.bfloat16)   # (128, TN)
        y = mxu_layer(h, w5_ref, b5_ref)                        # (emb, TN) f32

        # Fully-valid tile: plain lane-dense store (no masking work).
        @pl.when(tile_start + tile_n <= n_valid)
        def _():
            out_ref[0] = y.astype(out_ref.dtype)

        # Partial tile: mask points whose global index >= pn[b].
        @pl.when(tile_start + tile_n > n_valid)
        def _():
            pt = tile_start + lax.broadcasted_iota(jnp.int32, (1, tile_n), 1)
            out_ref[0] = jnp.where(pt < n_valid, y, 0.0).astype(out_ref.dtype)


def _pick_tile_n(N, B, emb_dims):
    """Largest point tile (multiple of 128, divides N, <= 2048) whose f32
    double-buffered output block stays within a v7x-safe VMEM budget, shrunk
    until the parallel grid has >= 4 steps (keeps both v7x TCs busy)."""
    if N % 128 != 0:
        return N                      # small / irregular N: one whole-N tile
    candidates = [t for t in (2048, 1024, 512, 256, 128) if t <= N and N % t == 0]
    if not candidates:
        return N
    budget = 16 * 1024 * 1024         # double-buffered f32 output block
    tile = next((t for t in candidates if 2 * emb_dims * t * 4 <= budget),
                candidates[-1])
    while tile > 128 and B * (N // tile) < 4 and (tile // 2) >= 128 \
            and N % (tile // 2) == 0:
        tile //= 2
    return tile


def feature_extractor_forward(xyz_ncw, params, pn=None, *, tile_n=None,
                              out_dtype=jnp.float32):
    """xyz_ncw: (B, 3, N) float32 (PyTorch NCW layout). Returns (B, emb, N)."""
    B, C_in, N = xyz_ncw.shape
    assert C_in == 3

    w1, w2, w3, w4, w5, b1, b2, b3, b4, b5 = params
    emb_dims = w5.shape[0]

    if tile_n is None:
        tile_n = _pick_tile_n(N, B, emb_dims)
    tile_n = min(tile_n, N)
    assert N % tile_n == 0
    assert tile_n % 128 == 0 or tile_n == N

    if pn is None:
        pn_arr = jnp.full((B,), N, dtype=jnp.int32)
    else:
        pn_arr = pn.astype(jnp.int32)

    x = xyz_ncw.astype(jnp.float32)
    full = lambda b, t, pn_ref: (0, 0)
    grid = (B, N // tile_n)

    out_itemsize = jnp.dtype(out_dtype).itemsize
    flops = 2 * B * N * (3 * 64 + 64 * 64 + 64 * 64 + 64 * 128 + 128 * emb_dims)
    bytes_accessed = (
        x.size * 4 + B * emb_dims * N * out_itemsize
        + sum(int(w.size) * 2 for w in (w1, w2, w3, w4, w5))
        + sum(int(bb.size) * 4 for bb in (b1, b2, b3, b4, b5)))

    out = pl.pallas_call(
        functools.partial(_feature_extractor_kernel, tile_n=tile_n),
        out_shape=jax.ShapeDtypeStruct((B, emb_dims, N), out_dtype),
        grid_spec=pltpu.PrefetchScalarGridSpec(
            num_scalar_prefetch=1,
            grid=grid,
            in_specs=[
                # input slab straight from NCW layout
                pl.BlockSpec((1, 3, tile_n), lambda b, t, pn_ref: (b, 0, t)),
                # BN-scale-folded bf16 weights (Cout, Cin); constant block
                # index -> fetched once, never re-DMA'd across the grid.
                pl.BlockSpec(w1.shape, full), pl.BlockSpec(w2.shape, full),
                pl.BlockSpec(w3.shape, full), pl.BlockSpec(w4.shape, full),
                pl.BlockSpec(w5.shape, full),
                # folded-BN biases (Cout, 1)
                pl.BlockSpec(b1.shape, full), pl.BlockSpec(b2.shape, full),
                pl.BlockSpec(b3.shape, full), pl.BlockSpec(b4.shape, full),
                pl.BlockSpec(b5.shape, full),
            ],
            out_specs=pl.BlockSpec(
                (1, emb_dims, tile_n), lambda b, t, pn_ref: (b, 0, t)),
        ),
        compiler_params=pltpu.CompilerParams(
            dimension_semantics=("parallel", "parallel"),
            # Safe on v7x (64 MiB physical, 16 MiB headroom) and lifts the
            # 16/32 MiB scoped defaults on v5e/v6e for large emb_dims.
            vmem_limit_bytes=48 * 1024 * 1024),
        cost_estimate=pl.CostEstimate(
            flops=flops, transcendentals=0, bytes_accessed=bytes_accessed),
    )(pn_arr, x, w1, w2, w3, w4, w5, b1, b2, b3, b4, b5)
    return out


# ----------------------------------------------------------------------------
# Deterministic parameter construction (synthetic; no checkpoint loading).
# Conv1d(kernel_size=1, bias=False) weight is (Cout, Cin, 1) in torch; we keep
# it as (Cout, Cin) with the inference-mode BatchNorm scale folded in:
#   scale = gamma / sqrt(running_var + eps)
#   w_folded = scale[:, None] * w            (bf16, MXU-native)
#   bias     = beta - running_mean * scale   (f32, shape (Cout, 1))
# ----------------------------------------------------------------------------
def make_params(key, emb_dims):
    dims = [(3, 64), (64, 64), (64, 64), (64, 128), (128, emb_dims)]
    weights, biases = [], []
    for cin, cout in dims:
        key, kw, kg, kb, km, kv = jax.random.split(key, 6)
        w = jax.random.normal(kw, (cout, cin), jnp.float32) * (1.0 / cin) ** 0.5
        gamma = 1.0 + 0.1 * jax.random.normal(kg, (cout,), jnp.float32)
        beta = 0.1 * jax.random.normal(kb, (cout,), jnp.float32)
        rmean = 0.1 * jax.random.normal(km, (cout,), jnp.float32)
        rvar = jnp.abs(1.0 + 0.1 * jax.random.normal(kv, (cout,), jnp.float32))
        eps = 1e-5
        scale = gamma / jnp.sqrt(rvar + eps)
        bias = beta - rmean * scale
        weights.append((w * scale[:, None]).astype(jnp.bfloat16))
        biases.append(bias.reshape(cout, 1).astype(jnp.float32))
    return tuple(weights) + tuple(biases)


def reference_forward(xyz_ncw, params, pn=None):
    """Pure-JAX reference mirroring the kernel's precision model:
    layer 1 in f32 (VPU path), layers 2-5 bf16 matmuls with f32 accumulation,
    f32 bias + ReLU."""
    w_list, b_list = params[:5], params[5:]
    x = jnp.einsum('oc,bcn->bon', w_list[0].astype(jnp.float32),
                   xyz_ncw.astype(jnp.float32))
    x = jnp.maximum(x + b_list[0][None], 0.0).astype(jnp.bfloat16)
    for i in range(1, 5):
        y = jnp.einsum('oc,bcn->bon', w_list[i], x,
                       preferred_element_type=jnp.float32)
        y = jnp.maximum(y + b_list[i][None], 0.0)
        x = y if i == 4 else y.astype(jnp.bfloat16)
    if pn is not None:
        B, _, N = xyz_ncw.shape
        idx = jnp.arange(N)[None, None, :]                  # (1, 1, N)
        mask = idx < pn.reshape(-1, 1, 1)
        x = jnp.where(mask, x, 0.0)
    return x                                                # (B, emb, N) f32


if __name__ == "__main__":
    B, N, EMB = 2, 1024, 64
    key = jax.random.PRNGKey(0)
    key, kx = jax.random.split(key)

    xyz = jax.random.normal(kx, (B, 3, N), jnp.float32)     # PyTorch NCW input
    # pn chosen so tiles hit all three paths: fully valid / partial / fully masked
    pn = jnp.array([700, 300], dtype=jnp.int32)
    params = make_params(key, EMB)

    # pn provided (auto tile_n; f32 output, spec-faithful)
    out_masked = jax.block_until_ready(
        feature_extractor_forward(xyz, params, pn=pn))
    ref_masked = reference_forward(xyz, params, pn=pn)
    assert out_masked.shape == (B, EMB, N)
    assert jnp.allclose(out_masked, ref_masked, atol=2e-2, rtol=2e-2), float(
        jnp.max(jnp.abs(out_masked - ref_masked)))

    # pn=None path
    out_plain = jax.block_until_ready(
        feature_extractor_forward(xyz, params, pn=None))
    ref_plain = reference_forward(xyz, params, pn=None)
    assert jnp.allclose(out_plain, ref_plain, atol=2e-2, rtol=2e-2), float(
        jnp.max(jnp.abs(out_plain - ref_plain)))

    # bf16 output path (halves the dominant HBM writeback on v5e/v6e)
    out_bf16 = jax.block_until_ready(
        feature_extractor_forward(xyz, params, pn=pn, out_dtype=jnp.bfloat16))
    assert jnp.allclose(out_bf16.astype(jnp.float32), ref_masked,
                        atol=5e-2, rtol=5e-2), float(
        jnp.max(jnp.abs(out_bf16.astype(jnp.float32) - ref_masked)))

    print("KERNEL_OK")
</pallas_src>

<mosaic_0001>
module attributes {stable_mosaic.version = 11 : i64} {
  func.func @_feature_extractor_kernel(%arg0: i32, %arg1: i32, %arg2: memref<2xi32, #tpu.memory_space<smem>>, %arg3: memref<1x3x512xf32, #tpu.memory_space<vmem>>, %arg4: memref<64x3xbf16, #tpu.memory_space<vmem>>, %arg5: memref<64x64xbf16, #tpu.memory_space<vmem>>, %arg6: memref<64x64xbf16, #tpu.memory_space<vmem>>, %arg7: memref<128x64xbf16, #tpu.memory_space<vmem>>, %arg8: memref<64x128xbf16, #tpu.memory_space<vmem>>, %arg9: memref<64x1xf32, #tpu.memory_space<vmem>>, %arg10: memref<64x1xf32, #tpu.memory_space<vmem>>, %arg11: memref<64x1xf32, #tpu.memory_space<vmem>>, %arg12: memref<128x1xf32, #tpu.memory_space<vmem>>, %arg13: memref<64x1xf32, #tpu.memory_space<vmem>>, %arg14: memref<1x64x512xf32, #tpu.memory_space<vmem>>) attributes {dimension_semantics = [#tpu.dimension_semantics<parallel>, #tpu.dimension_semantics<parallel>], iteration_bounds = array<i64: 2, 2>, scalar_prefetch = 1 : i64, scratch_operands = 0 : i64, tpu.core_type = #tpu.core_type<tc>, window_params = [{transform_indices = @transform_0, window_bounds = array<i64: 1, 3, 512>}, {pipeline_mode = #tpu.pipeline_mode<synchronous>, transform_indices = @transform_1, window_bounds = array<i64: 64, 3>}, {pipeline_mode = #tpu.pipeline_mode<synchronous>, transform_indices = @transform_2, window_bounds = array<i64: 64, 64>}, {pipeline_mode = #tpu.pipeline_mode<synchronous>, transform_indices = @transform_3, window_bounds = array<i64: 64, 64>}, {pipeline_mode = #tpu.pipeline_mode<synchronous>, transform_indices = @transform_4, window_bounds = array<i64: 128, 64>}, {pipeline_mode = #tpu.pipeline_mode<synchronous>, transform_indices = @transform_5, window_bounds = array<i64: 64, 128>}, {pipeline_mode = #tpu.pipeline_mode<synchronous>, transform_indices = @transform_6, window_bounds = array<i64: 64, 1>}, {pipeline_mode = #tpu.pipeline_mode<synchronous>, transform_indices = @transform_7, window_bounds = array<i64: 64, 1>}, {pipeline_mode = #tpu.pipeline_mode<synchronous>, transform_indices = @transform_8, window_bounds = array<i64: 64, 1>}, {pipeline_mode = #tpu.pipeline_mode<synchronous>, transform_indices = @transform_9, window_bounds = array<i64: 128, 1>}, {pipeline_mode = #tpu.pipeline_mode<synchronous>, transform_indices = @transform_10, window_bounds = array<i64: 64, 1>}, {transform_indices = @transform_11, window_bounds = array<i64: 1, 64, 512>}]} {
    %c512_i32 = arith.constant 512 : i32
    %0 = arith.muli %arg1, %c512_i32 : i32
    %1 = arith.index_cast %arg0 : i32 to index
    %2 = memref.load %arg2[%1] : memref<2xi32, #tpu.memory_space<smem>>
    %3 = arith.cmpi sge, %0, %2 : i32
    %4 = arith.extui %3 : i1 to i32
    %c0_i32 = arith.constant 0 : i32
    %5 = arith.cmpi ne, %4, %c0_i32 : i32
    scf.if %5 {
      %cst = arith.constant 0.000000e+00 : f32
      %9 = vector.broadcast %cst : f32 to vector<1x64x512xf32>
      %c0 = arith.constant 0 : index
      %c0_1 = arith.constant 0 : index
      %c0_2 = arith.constant 0 : index
      %10 = vector.load %arg14[%c0, %c0_1, %c0_2] : memref<1x64x512xf32, #tpu.memory_space<vmem>>, vector<1x64x512xf32>
      tpu.vector_store %arg14[%c0, %c0_1, %c0_2], %9 {strides = array<i32>} : memref<1x64x512xf32, #tpu.memory_space<vmem>>, vector<1x64x512xf32>,
    } else {
    }
    %6 = arith.cmpi slt, %0, %2 : i32
    %7 = arith.extui %6 : i1 to i32
    %c0_i32_0 = arith.constant 0 : i32
    %8 = arith.cmpi ne, %7, %c0_i32_0 : i32
    scf.if %8 {
      %c0 = arith.constant 0 : index
      %c0_1 = arith.constant 0 : index
      %c0_2 = arith.constant 0 : index
      %9 = vector.load %arg3[%c0, %c0_1, %c0_2] : memref<1x3x512xf32, #tpu.memory_space<vmem>>, vector<1x3x512xf32>
      %10 = vector.shape_cast %9 : vector<1x3x512xf32> to vector<3x512xf32>
      %c0_3 = arith.constant 0 : index
      %c0_4 = arith.constant 0 : index
      %11 = vector.load %arg4[%c0_3, %c0_4] : memref<64x3xbf16, #tpu.memory_space<vmem>>, vector<64x3xbf16>
      %12 = arith.extf %11 : vector<64x3xbf16> to vector<64x3xf32>
      %13 = vector.extract_strided_slice %12 {offsets = [0, 0], sizes = [64, 1], strides = [1, 1]} : vector<64x3xf32> to vector<64x1xf32>
      %14 = vector.extract_strided_slice %10 {offsets = [0, 0], sizes = [1, 512], strides = [1, 1]} : vector<3x512xf32> to vector<1x512xf32>
      %15 = vector.broadcast %13 : vector<64x1xf32> to vector<64x512xf32>
      %16 = vector.broadcast %14 : vector<1x512xf32> to vector<64x512xf32>
      %17 = arith.mulf %15, %16 : vector<64x512xf32>
      %18 = vector.extract_strided_slice %12 {offsets = [0, 1], sizes = [64, 1], strides = [1, 1]} : vector<64x3xf32> to vector<64x1xf32>
      %19 = vector.extract_strided_slice %10 {offsets = [1, 0], sizes = [1, 512], strides = [1, 1]} : vector<3x512xf32> to vector<1x512xf32>
      %20 = vector.broadcast %18 : vector<64x1xf32> to vector<64x512xf32>
      %21 = vector.broadcast %19 : vector<1x512xf32> to vector<64x512xf32>
      %22 = arith.mulf %20, %21 : vector<64x512xf32>
      %23 = arith.addf %17, %22 : vector<64x512xf32>
      %24 = vector.extract_strided_slice %12 {offsets = [0, 2], sizes = [64, 1], strides = [1, 1]} : vector<64x3xf32> to vector<64x1xf32>
      %25 = vector.extract_strided_slice %10 {offsets = [2, 0], sizes = [1, 512], strides = [1, 1]} : vector<3x512xf32> to vector<1x512xf32>
      %26 = vector.broadcast %24 : vector<64x1xf32> to vector<64x512xf32>
      %27 = vector.broadcast %25 : vector<1x512xf32> to vector<64x512xf32>
      %28 = arith.mulf %26, %27 : vector<64x512xf32>
      %29 = arith.addf %23, %28 : vector<64x512xf32>
      %c0_5 = arith.constant 0 : index
      %c0_6 = arith.constant 0 : index
      %30 = vector.load %arg9[%c0_5, %c0_6] : memref<64x1xf32, #tpu.memory_space<vmem>>, vector<64x1xf32>
      %31 = vector.broadcast %30 : vector<64x1xf32> to vector<64x512xf32>
      %32 = arith.addf %29, %31 : vector<64x512xf32>
      %cst = arith.constant 0.000000e+00 : f32
      %33 = vector.broadcast %cst : f32 to vector<64x512xf32>
      %34 = arith.maximumf %32, %33 : vector<64x512xf32>
      %35 = arith.truncf %34 : vector<64x512xf32> to vector<64x512xbf16>
      %c0_7 = arith.constant 0 : index
      %c0_8 = arith.constant 0 : index
      %36 = vector.load %arg5[%c0_7, %c0_8] : memref<64x64xbf16, #tpu.memory_space<vmem>>, vector<64x64xbf16>
      %cst_9 = arith.constant dense<0.000000e+00> : vector<64x512xf32>
      %37 = tpu.matmul %36, %35, %cst_9 {dimension_numbers = #tpu.dot_dimension_numbers<[1], [0], [0], [1], [0, 0, 1, 1], [], []>} : vector<64x64xbf16>, vector<64x512xbf16>, vector<64x512xf32> -> vector<64x512xf32>
      %c0_10 = arith.constant 0 : index
      %c0_11 = arith.constant 0 : index
      %38 = vector.load %arg10[%c0_10, %c0_11] : memref<64x1xf32, #tpu.memory_space<vmem>>, vector<64x1xf32>
      %39 = vector.broadcast %38 : vector<64x1xf32> to vector<64x512xf32>
      %40 = arith.addf %37, %39 : vector<64x512xf32>
      %cst_12 = arith.constant 0.000000e+00 : f32
      %41 = vector.broadcast %cst_12 : f32 to vector<64x512xf32>
      %42 = arith.maximumf %40, %41 : vector<64x512xf32>
      %43 = arith.truncf %42 : vector<64x512xf32> to vector<64x512xbf16>
      %c0_13 = arith.constant 0 : index
      %c0_14 = arith.constant 0 : index
      %44 = vector.load %arg6[%c0_13, %c0_14] : memref<64x64xbf16, #tpu.memory_space<vmem>>, vector<64x64xbf16>
      %cst_15 = arith.constant dense<0.000000e+00> : vector<64x512xf32>
      %45 = tpu.matmul %44, %43, %cst_15 {dimension_numbers = #tpu.dot_dimension_numbers<[1], [0], [0], [1], [0, 0, 1, 1], [], []>} : vector<64x64xbf16>, vector<64x512xbf16>, vector<64x512xf32> -> vector<64x512xf32>
      %c0_16 = arith.constant 0 : index
      %c0_17 = arith.constant 0 : index
      %46 = vector.load %arg11[%c0_16, %c0_17] : memref<64x1xf32, #tpu.memory_space<vmem>>, vector<64x1xf32>
      %47 = vector.broadcast %46 : vector<64x1xf32> to vector<64x512xf32>
      %48 = arith.addf %45, %47 : vector<64x512xf32>
      %cst_18 = arith.constant 0.000000e+00 : f32
      %49 = vector.broadcast %cst_18 : f32 to vector<64x512xf32>
      %50 = arith.maximumf %48, %49 : vector<64x512xf32>
      %51 = arith.truncf %50 : vector<64x512xf32> to vector<64x512xbf16>
      %c0_19 = arith.constant 0 : index
      %c0_20 = arith.constant 0 : index
      %52 = vector.load %arg7[%c0_19, %c0_20] : memref<128x64xbf16, #tpu.memory_space<vmem>>, vector<128x64xbf16>
      %cst_21 = arith.constant dense<0.000000e+00> : vector<128x512xf32>
      %53 = tpu.matmul %52, %51, %cst_21 {dimension_numbers = #tpu.dot_dimension_numbers<[1], [0], [0], [1], [0, 0, 1, 1], [], []>} : vector<128x64xbf16>, vector<64x512xbf16>, vector<128x512xf32> -> vector<128x512xf32>
      %c0_22 = arith.constant 0 : index
      %c0_23 = arith.constant 0 : index
      %54 = vector.load %arg12[%c0_22, %c0_23] : memref<128x1xf32, #tpu.memory_space<vmem>>, vector<128x1xf32>
      %55 = vector.broadcast %54 : vector<128x1xf32> to vector<128x512xf32>
      %56 = arith.addf %53, %55 : vector<128x512xf32>
      %cst_24 = arith.constant 0.000000e+00 : f32
      %57 = vector.broadcast %cst_24 : f32 to vector<128x512xf32>
      %58 = arith.maximumf %56, %57 : vector<128x512xf32>
      %59 = arith.truncf %58 : vector<128x512xf32> to vector<128x512xbf16>
      %c0_25 = arith.constant 0 : index
      %c0_26 = arith.constant 0 : index
      %60 = vector.load %arg8[%c0_25, %c0_26] : memref<64x128xbf16, #tpu.memory_space<vmem>>, vector<64x128xbf16>
      %cst_27 = arith.constant dense<0.000000e+00> : vector<64x512xf32>
      %61 = tpu.matmul %60, %59, %cst_27 {dimension_numbers = #tpu.dot_dimension_numbers<[1], [0], [0], [1], [0, 0, 1, 1], [], []>} : vector<64x128xbf16>, vector<128x512xbf16>, vector<64x512xf32> -> vector<64x512xf32>
      %c0_28 = arith.constant 0 : index
      %c0_29 = arith.constant 0 : index
      %62 = vector.load %arg13[%c0_28, %c0_29] : memref<64x1xf32, #tpu.memory_space<vmem>>, vector<64x1xf32>
      %63 = vector.broadcast %62 : vector<64x1xf32> to vector<64x512xf32>
      %64 = arith.addf %61, %63 : vector<64x512xf32>
      %cst_30 = arith.constant 0.000000e+00 : f32
      %65 = vector.broadcast %cst_30 : f32 to vector<64x512xf32>
      %66 = arith.maximumf %64, %65 : vector<64x512xf32>
      %c512_i32_31 = arith.constant 512 : i32
      %67 = arith.addi %0, %c512_i32_31 : i32
      %68 = arith.cmpi sle, %67, %2 : i32
      %69 = arith.extui %68 : i1 to i32
      %c0_i32_32 = arith.constant 0 : i32
      %70 = arith.cmpi ne, %69, %c0_i32_32 : i32
      scf.if %70 {
        %c0_35 = arith.constant 0 : index
        %c0_36 = arith.constant 0 : index
        %c0_37 = arith.constant 0 : index
        %75 = vector.load %arg14[%c0_35, %c0_36, %c0_37] : memref<1x64x512xf32, #tpu.memory_space<vmem>>, vector<1x64x512xf32>
        %76 = vector.shape_cast %75 : vector<1x64x512xf32> to vector<64x512xf32>
        %77 = vector.shape_cast %66 : vector<64x512xf32> to vector<1x64x512xf32>
        tpu.vector_store %arg14[%c0_35, %c0_36, %c0_37], %77 {strides = array<i32>} : memref<1x64x512xf32, #tpu.memory_space<vmem>>, vector<1x64x512xf32>,
      } else {
      }
      %c512_i32_33 = arith.constant 512 : i32
      %71 = arith.addi %0, %c512_i32_33 : i32
      %72 = arith.cmpi sgt, %71, %2 : i32
      %73 = arith.extui %72 : i1 to i32
      %c0_i32_34 = arith.constant 0 : i32
      %74 = arith.cmpi ne, %73, %c0_i32_34 : i32
      scf.if %74 {
        %75 = tpu.iota {dimensions = array<i32: 1>} : vector<1x512xi32>
        %76 = vector.broadcast %0 : i32 to vector<1x512xi32>
        %77 = arith.addi %76, %75 : vector<1x512xi32>
        %78 = vector.broadcast %2 : i32 to vector<1x512xi32>
        %79 = arith.cmpi slt, %77, %78 : vector<1x512xi32>
        %cst_35 = arith.constant 0.000000e+00 : f32
        %80 = vector.shape_cast %79 : vector<1x512xi1> to vector<1x512xi1>
        %81 = vector.broadcast %80 : vector<1x512xi1> to vector<64x512xi1>
        %82 = vector.broadcast %cst_35 : f32 to vector<64x512xf32>
        %83 = arith.select %81, %66, %82 : vector<64x512xi1>, vector<64x512xf32>
        %c0_36 = arith.constant 0 : index
        %c0_37 = arith.constant 0 : index
        %c0_38 = arith.constant 0 : index
        %84 = vector.load %arg14[%c0_36, %c0_37, %c0_38] : memref<1x64x512xf32, #tpu.memory_space<vmem>>, vector<1x64x512xf32>
        %85 = vector.shape_cast %84 : vector<1x64x512xf32> to vector<64x512xf32>
        %86 = vector.shape_cast %83 : vector<64x512xf32> to vector<1x64x512xf32>
        tpu.vector_store %arg14[%c0_36, %c0_37, %c0_38], %86 {strides = array<i32>} : memref<1x64x512xf32, #tpu.memory_space<vmem>>, vector<1x64x512xf32>,
      } else {
      }
    } else {
    }
    return
  }
  func.func @transform_0(%arg0: i32, %arg1: i32, %arg2: memref<2xi32, #tpu.memory_space<smem>>) -> (i32, i32, i32) {
    %c0_i32 = arith.constant 0 : i32
    %c0_i32_0 = arith.constant 0 : i32
    return %arg0, %c0_i32, %arg1 : i32, i32, i32
  }
  func.func @transform_1(%arg0: i32, %arg1: i32, %arg2: memref<2xi32, #tpu.memory_space<smem>>) -> (i32, i32) {
    %c0_i32 = arith.constant 0 : i32
    %c0_i32_0 = arith.constant 0 : i32
    %c0_i32_1 = arith.constant 0 : i32
    return %c0_i32, %c0_i32_0 : i32, i32
  }
  func.func @transform_2(%arg0: i32, %arg1: i32, %arg2: memref<2xi32, #tpu.memory_space<smem>>) -> (i32, i32) {
    %c0_i32 = arith.constant 0 : i32
    %c0_i32_0 = arith.constant 0 : i32
    %c0_i32_1 = arith.constant 0 : i32
    return %c0_i32, %c0_i32_0 : i32, i32
  }
  func.func @transform_3(%arg0: i32, %arg1: i32, %arg2: memref<2xi32, #tpu.memory_space<smem>>) -> (i32, i32) {
    %c0_i32 = arith.constant 0 : i32
    %c0_i32_0 = arith.constant 0 : i32
    %c0_i32_1 = arith.constant 0 : i32
    return %c0_i32, %c0_i32_0 : i32, i32
  }
  func.func @transform_4(%arg0: i32, %arg1: i32, %arg2: memref<2xi32, #tpu.memory_space<smem>>) -> (i32, i32) {
    %c0_i32 = arith.constant 0 : i32
    %c0_i32_0 = arith.constant 0 : i32
    %c0_i32_1 = arith.constant 0 : i32
    return %c0_i32, %c0_i32_0 : i32, i32
  }
  func.func @transform_5(%arg0: i32, %arg1: i32, %arg2: memref<2xi32, #tpu.memory_space<smem>>) -> (i32, i32) {
    %c0_i32 = arith.constant 0 : i32
    %c0_i32_0 = arith.constant 0 : i32
    %c0_i32_1 = arith.constant 0 : i32
    return %c0_i32, %c0_i32_0 : i32, i32
  }
  func.func @transform_6(%arg0: i32, %arg1: i32, %arg2: memref<2xi32, #tpu.memory_space<smem>>) -> (i32, i32) {
    %c0_i32 = arith.constant 0 : i32
    %c0_i32_0 = arith.constant 0 : i32
    %c0_i32_1 = arith.constant 0 : i32
    return %c0_i32, %c0_i32_0 : i32, i32
  }
  func.func @transform_7(%arg0: i32, %arg1: i32, %arg2: memref<2xi32, #tpu.memory_space<smem>>) -> (i32, i32) {
    %c0_i32 = arith.constant 0 : i32
    %c0_i32_0 = arith.constant 0 : i32
    %c0_i32_1 = arith.constant 0 : i32
    return %c0_i32, %c0_i32_0 : i32, i32
  }
  func.func @transform_8(%arg0: i32, %arg1: i32, %arg2: memref<2xi32, #tpu.memory_space<smem>>) -> (i32, i32) {
    %c0_i32 = arith.constant 0 : i32
    %c0_i32_0 = arith.constant 0 : i32
    %c0_i32_1 = arith.constant 0 : i32
    return %c0_i32, %c0_i32_0 : i32, i32
  }
  func.func @transform_9(%arg0: i32, %arg1: i32, %arg2: memref<2xi32, #tpu.memory_space<smem>>) -> (i32, i32) {
    %c0_i32 = arith.constant 0 : i32
    %c0_i32_0 = arith.constant 0 : i32
    %c0_i32_1 = arith.constant 0 : i32
    return %c0_i32, %c0_i32_0 : i32, i32
  }
  func.func @transform_10(%arg0: i32, %arg1: i32, %arg2: memref<2xi32, #tpu.memory_space<smem>>) -> (i32, i32) {
    %c0_i32 = arith.constant 0 : i32
    %c0_i32_0 = arith.constant 0 : i32
    %c0_i32_1 = arith.constant 0 : i32
    return %c0_i32, %c0_i32_0 : i32, i32
  }
  func.func @transform_11(%arg0: i32, %arg1: i32, %arg2: memref<2xi32, #tpu.memory_space<smem>>) -> (i32, i32, i32) {
    %c0_i32 = arith.constant 0 : i32
    %c0_i32_0 = arith.constant 0 : i32
    return %arg0, %c0_i32, %arg1 : i32, i32, i32
  }
}

</mosaic_0001>

<llo_original>
// kernel: tpu_custom_call.1
$region0: #{tpu_custom_call.1}
  #allocation0 [shape = 'u32[]', space=smem, size = 0x4, offset = 0x4, fixed_abs, tag = 'smem constant byte address 0x4 - core index']
  #allocation1 [shape = 'u32[144,128]{1,0:T(1,128)}', space=vmem, size = 0x12000, scoped, tag = 'internal scratch']
  #allocation2 [shape = 's32[1]{0}', space=sflag, size = 0x4, scoped, tag = 'scoped memory for tpu_custom_call.1']
  #allocation3 [shape = 'u8[512]{0}', space=smem, size = 0x200, scoped, tag = 'prefetched SMEM operand 0']
  %s0 = inlined_call_operand.vmem [shape: s32[2], index: 0, kind: input, shape index: {}]
  %s1 = inlined_call_operand.vmem [shape: f32[2,3,1024], index: 1, kind: input, shape index: {}]
  %s2 = inlined_call_operand.vmem [shape: bf16[64,3], index: 2, kind: input, shape index: {}]
  %s3 = inlined_call_operand.vmem [shape: bf16[64,64], index: 3, kind: input, shape index: {}]
  %s4 = inlined_call_operand.vmem [shape: bf16[64,64], index: 4, kind: input, shape index: {}]
  %s5 = inlined_call_operand.vmem [shape: bf16[128,64], index: 5, kind: input, shape index: {}]
  %s6 = inlined_call_operand.vmem [shape: bf16[64,128], index: 6, kind: input, shape index: {}]
  %s7 = inlined_call_operand.vmem [shape: f32[64,1], index: 7, kind: input, shape index: {}]
  %s8 = inlined_call_operand.vmem [shape: f32[64,1], index: 8, kind: input, shape index: {}]
  %s9 = inlined_call_operand.vmem [shape: f32[64,1], index: 9, kind: input, shape index: {}]
  %s10 = inlined_call_operand.vmem [shape: f32[128,1], index: 10, kind: input, shape index: {}]
  %s11 = inlined_call_operand.vmem [shape: f32[64,1], index: 11, kind: input, shape index: {}]
  %s12 = inlined_call_operand.hbm [shape: f32[2,64,1024], index: 12, kind: output, shape index: {}]
  %s13 = sld [smem:[#allocation0]]
  $region93: #{tpu_custom_call.1} parent=0
    _
  %s15 = ssub.s32 1, %s13
  %s16 = scalar_select 0, %s15, %s13
  %s17 = sshll.u32 %s0, 4
  %s18 = int_to_ptr.vmem [resolvable:$true] %s17
  %20 = dma.vmem_to_smem %s18, 16, [#allocation3], [#allocation2]
  %21 = dma.done [#allocation2], 16
  %22 = sfence
  $region1: #{tpu_custom_call.1} parent=0
    #allocation4 [shape = 'u8[262144]{0}', space=vmem, size = 0x40000, scoped, tag = 'output window, operand 0']
    #allocation5 [shape = 's32[2]{0}', space=sflag, size = 0x8, scoped, tag = 'scoped memory for tpu_custom_call.1']
    %23 = vsyncpa [#allocation5], 0
    %s24 = scalar_lea.sflag [#allocation5], 1
    %25 = vsyncpa %s24, 0
    loop: start=0, step=1, limit=6
    $region2: #{tpu_custom_call.1} parent=1 // loop_pre_header
      _
    $region3: #{tpu_custom_call.1} parent=1 // loop_header
      %s27 = sphi 0, %s31
      %p28 = scmp.ge.s32.totalorder %s27, 6
      %s34 = sphi 0, %s46
      %s35 = sphi 0, %s42
      %s36 = sphi 0, %s34
      %s37 = sphi 0, %s35
      %s38 = sphi 0, %s36
      %s39 = sphi 0, %s37
      %s51 = sphi 0, %s53
      %s54 = sphi 0, %s51
      %s55 = sphi 0, %s54
      %s71 = sphi 0, %s55
      %s75 = sphi 0, %s75
      %s77 = sphi 0, %s75
      %s78 = sphi 0, %s77
      %s92 = sphi 0, %s78
      %s96 = sphi 0, %s96
      %s98 = sphi 0, %s96
      %s99 = sphi 0, %s98
      %s113 = sphi 0, %s99
      %s117 = sphi 0, %s117
      %s119 = sphi 0, %s117
      %s120 = sphi 0, %s119
      %s134 = sphi 0, %s120
      %s138 = sphi 0, %s138
      %s140 = sphi 0, %s138
      %s141 = sphi 0, %s140
      %s155 = sphi 0, %s141
      %s159 = sphi 0, %s159
      %s161 = sphi 0, %s159
      %s162 = sphi 0, %s161
      %s176 = sphi 0, %s162
      %s180 = sphi 0, %s180
      %s182 = sphi 0, %s180
      %s183 = sphi 0, %s182
      %s197 = sphi 0, %s183
      %s201 = sphi 0, %s201
      %s203 = sphi 0, %s201
      %s204 = sphi 0, %s203
      %s218 = sphi 0, %s204
      %s222 = sphi 0, %s222
      %s224 = sphi 0, %s222
      %s225 = sphi 0, %s224
      %s239 = sphi 0, %s225
      %s243 = sphi 0, %s243
      %s245 = sphi 0, %s243
      %s246 = sphi 0, %s245
      %s260 = sphi 0, %s246
      %s264 = sphi 0, %s264
      %s266 = sphi 0, %s264
      %s267 = sphi 0, %s266
      %s281 = sphi 0, %s267
      %s289 = sphi 0, %s291
      %s292 = sphi 0, %s289
      %s293 = sphi 0, %s292
      %s309 = sphi 0, %s293
    $region4: #{tpu_custom_call.1} parent=1 // loop_header_branch
      %30 = sbr.rel (%p28) target = $region8
    $region5: #{tpu_custom_call.1} parent=1 // loop_body
      %s32 = ssub.s32 %s27, 1
      %s33 = ssub.s32 %s27, 2
      %s40 = sadd.s32 1, %s35
      %p41 = scmp.ge.s32.totalorder %s40, 2
      %s42 = scalar_select %p41, 0, %s40
      %s43 = sadd.s32 1, %s34
      %s44 = scalar_select %p41, %s43, %s34
      %p45 = scmp.ge.s32.totalorder %s44, 2
      %s46 = scalar_select %p45, 0, %s44
      %s47 = ssub.s32 %s34, %s46
      %s48 = ssub.s32 %s35, %s42
      %s49 = sor.u32 %s47, %s48
      %p50 = scmp.eq.s32.totalorder %s49, 0
      %s52 = sadd.s32 %s51, 1
      %s53 = scalar_select %p50, %s51, %s52
      %p56 = pneg %p50
      %p57 = scmp.eq.s32.totalorder %s27, 3
      %p58 = por %p56, %p57
      %p59 = scmp.ne.s32.totalorder %s51, %s54
      %p60 = scmp.eq.s32.totalorder %s27, 0
      %p61 = por %p59, %p60
      %p62 = scmp.ne.s32.totalorder %s51, %s54
      %p63 = scmp.eq.s32.totalorder %s32, 3
      %p64 = por %p62, %p63
      %p65 = scmp.ne.s32.totalorder %s54, %s55
      %p66 = scmp.eq.s32.totalorder %s32, 0
      %p67 = por %p65, %p66
      %p68 = scmp.ne.s32.totalorder %s54, %s55
      %p69 = scmp.eq.s32.totalorder %s33, 3
      %p70 = por %p68, %p69
      %p72 = scmp.ne.s32.totalorder %s55, %s71
      %p73 = scmp.eq.s32.totalorder %s33, 0
      %p74 = por %p72, %p73
      %s76 = sadd.s32 %s75, 1
      %p79 = scmp.eq.s32.totalorder %s27, 3
      %p80 = scmp.ne.s32.totalorder %s75, %s77
      %p81 = scmp.eq.s32.totalorder %s27, 0
      %p82 = por %p80, %p81
      %p83 = scmp.ne.s32.totalorder %s75, %s77
      %p84 = scmp.eq.s32.totalorder %s32, 3
      %p85 = por %p83, %p84
      %p86 = scmp.ne.s32.totalorder %s77, %s78
      %p87 = scmp.eq.s32.totalorder %s32, 0
      %p88 = por %p86, %p87
      %p89 = scmp.ne.s32.totalorder %s77, %s78
      %p90 = scmp.eq.s32.totalorder %s33, 3
      %p91 = por %p89, %p90
      %p93 = scmp.ne.s32.totalorder %s78, %s92
      %p94 = scmp.eq.s32.totalorder %s33, 0
      %p95 = por %p93, %p94
      %s97 = sadd.s32 %s96, 1
      %p100 = scmp.eq.s32.totalorder %s27, 3
      %p101 = scmp.ne.s32.totalorder %s96, %s98
      %p102 = scmp.eq.s32.totalorder %s27, 0
      %p103 = por %p101, %p102
      %p104 = scmp.ne.s32.totalorder %s96, %s98
      %p105 = scmp.eq.s32.totalorder %s32, 3
      %p106 = por %p104, %p105
      %p107 = scmp.ne.s32.totalorder %s98, %s99
      %p108 = scmp.eq.s32.totalorder %s32, 0
      %p109 = por %p107, %p108
      %p110 = scmp.ne.s32.totalorder %s98, %s99
      %p111 = scmp.eq.s32.totalorder %s33, 3
      %p112 = por %p110, %p111
      %p114 = scmp.ne.s32.totalorder %s99, %s113
      %p115 = scmp.eq.s32.totalorder %s33, 0
      %p116 = por %p114, %p115
      %s118 = sadd.s32 %s117, 1
      %p121 = scmp.eq.s32.totalorder %s27, 3
      %p122 = scmp.ne.s32.totalorder %s117, %s119
      %p123 = scmp.eq.s32.totalorder %s27, 0
      %p124 = por %p122, %p123
      %p125 = scmp.ne.s32.totalorder %s117, %s119
      %p126 = scmp.eq.s32.totalorder %s32, 3
      %p127 = por %p125, %p126
      %p128 = scmp.ne.s32.totalorder %s119, %s120
      %p129 = scmp.eq.s32.totalorder %s32, 0
      %p130 = por %p128, %p129
      %p131 = scmp.ne.s32.totalorder %s119, %s120
      %p132 = scmp.eq.s32.totalorder %s33, 3
      %p133 = por %p131, %p132
      %p135 = scmp.ne.s32.totalorder %s120, %s134
      %p136 = scmp.eq.s32.totalorder %s33, 0
      %p137 = por %p135, %p136
      %s139 = sadd.s32 %s138, 1
      %p142 = scmp.eq.s32.totalorder %s27, 3
      %p143 = scmp.ne.s32.totalorder %s138, %s140
      %p144 = scmp.eq.s32.totalorder %s27, 0
      %p145 = por %p143, %p144
      %p146 = scmp.ne.s32.totalorder %s138, %s140
      %p147 = scmp.eq.s32.totalorder %s32, 3
      %p148 = por %p146, %p147
      %p149 = scmp.ne.s32.totalorder %s140, %s141
      %p150 = scmp.eq.s32.totalorder %s32, 0
      %p151 = por %p149, %p150
      %p152 = scmp.ne.s32.totalorder %s140, %s141
      %p153 = scmp.eq.s32.totalorder %s33, 3
      %p154 = por %p152, %p153
      %p156 = scmp.ne.s32.totalorder %s141, %s155
      %p157 = scmp.eq.s32.totalorder %s33, 0
      %p158 = por %p156, %p157
      %s160 = sadd.s32 %s159, 1
      %p163 = scmp.eq.s32.totalorder %s27, 3
      %p164 = scmp.ne.s32.totalorder %s159, %s161
      %p165 = scmp.eq.s32.totalorder %s27, 0
      %p166 = por %p164, %p165
      %p167 = scmp.ne.s32.totalorder %s159, %s161
      %p168 = scmp.eq.s32.totalorder %s32, 3
      %p169 = por %p167, %p168
      %p170 = scmp.ne.s32.totalorder %s161, %s162
      %p171 = scmp.eq.s32.totalorder %s32, 0
      %p172 = por %p170, %p171
      %p173 = scmp.ne.s32.totalorder %s161, %s162
      %p174 = scmp.eq.s32.totalorder %s33, 3
      %p175 = por %p173, %p174
      %p177 = scmp.ne.s32.totalorder %s162, %s176
      %p178 = scmp.eq.s32.totalorder %s33, 0
      %p179 = por %p177, %p178
      %s181 = sadd.s32 %s180, 1
      %p184 = scmp.eq.s32.totalorder %s27, 3
      %p185 = scmp.ne.s32.totalorder %s180, %s182
      %p186 = scmp.eq.s32.totalorder %s27, 0
      %p187 = por %p185, %p186
      %p188 = scmp.ne.s32.totalorder %s180, %s182
      %p189 = scmp.eq.s32.totalorder %s32, 3
      %p190 = por %p188, %p189
      %p191 = scmp.ne.s32.totalorder %s182, %s183
      %p192 = scmp.eq.s32.totalorder %s32, 0
      %p193 = por %p191, %p192
      %p194 = scmp.ne.s32.totalorder %s182, %s183
      %p195 = scmp.eq.s32.totalorder %s33, 3
      %p196 = por %p194, %p195
      %p198 = scmp.ne.s32.totalorder %s183, %s197
      %p199 = scmp.eq.s32.totalorder %s33, 0
      %p200 = por %p198, %p199
      %s202 = sadd.s32 %s201, 1
      %p205 = scmp.eq.s32.totalorder %s27, 3
      %p206 = scmp.ne.s32.totalorder %s201, %s203
      %p207 = scmp.eq.s32.totalorder %s27, 0
      %p208 = por %p206, %p207
      %p209 = scmp.ne.s32.totalorder %s201, %s203
      %p210 = scmp.eq.s32.totalorder %s32, 3
      %p211 = por %p209, %p210
      %p212 = scmp.ne.s32.totalorder %s203, %s204
      %p213 = scmp.eq.s32.totalorder %s32, 0
      %p214 = por %p212, %p213
      %p215 = scmp.ne.s32.totalorder %s203, %s204
      %p216 = scmp.eq.s32.totalorder %s33, 3
      %p217 = por %p215, %p216
      %p219 = scmp.ne.s32.totalorder %s204, %s218
      %p220 = scmp.eq.s32.totalorder %s33, 0
      %p221 = por %p219, %p220
      %s223 = sadd.s32 %s222, 1
      %p226 = scmp.eq.s32.totalorder %s27, 3
      %p227 = scmp.ne.s32.totalorder %s222, %s224
      %p228 = scmp.eq.s32.totalorder %s27, 0
      %p229 = por %p227, %p228
      %p230 = scmp.ne.s32.totalorder %s222, %s224
      %p231 = scmp.eq.s32.totalorder %s32, 3
      %p232 = por %p230, %p231
      %p233 = scmp.ne.s32.totalorder %s224, %s225
      %p234 = scmp.eq.s32.totalorder %s32, 0
      %p235 = por %p233, %p234
      %p236 = scmp.ne.s32.totalorder %s224, %s225
      %p237 = scmp.eq.s32.totalorder %s33, 3
      %p238 = por %p236, %p237
      %p240 = scmp.ne.s32.totalorder %s225, %s239
      %p241 = scmp.eq.s32.totalorder %s33, 0
      %p242 = por %p240, %p241
      %s244 = sadd.s32 %s243, 1
      %p247 = scmp.eq.s32.totalorder %s27, 3
      %p248 = scmp.ne.s32.totalorder %s243, %s245
      %p249 = scmp.eq.s32.totalorder %s27, 0
      %p250 = por %p248, %p249
      %p251 = scmp.ne.s32.totalorder %s243, %s245
      %p252 = scmp.eq.s32.totalorder %s32, 3
      %p253 = por %p251, %p252
      %p254 = scmp.ne.s32.totalorder %s245, %s246
      %p255 = scmp.eq.s32.totalorder %s32, 0
      %p256 = por %p254, %p255
      %p257 = scmp.ne.s32.totalorder %s245, %s246
      %p258 = scmp.eq.s32.totalorder %s33, 3
      %p259 = por %p257, %p258
      %p261 = scmp.ne.s32.totalorder %s246, %s260
      %p262 = scmp.eq.s32.totalorder %s33, 0
      %p263 = por %p261, %p262
      %s265 = sadd.s32 %s264, 1
      %p268 = scmp.eq.s32.totalorder %s27, 3
      %p269 = scmp.ne.s32.totalorder %s264, %s266
      %p270 = scmp.eq.s32.totalorder %s27, 0
      %p271 = por %p269, %p270
      %p272 = scmp.ne.s32.totalorder %s264, %s266
      %p273 = scmp.eq.s32.totalorder %s32, 3
      %p274 = por %p272, %p273
      %p275 = scmp.ne.s32.totalorder %s266, %s267
      %p276 = scmp.eq.s32.totalorder %s32, 0
      %p277 = por %p275, %p276
      %p278 = scmp.ne.s32.totalorder %s266, %s267
      %p279 = scmp.eq.s32.totalorder %s33, 3
      %p280 = por %p278, %p279
      %p282 = scmp.ne.s32.totalorder %s267, %s281
      %p283 = scmp.eq.s32.totalorder %s33, 0
      %p284 = por %p282, %p283
      %s285 = ssub.s32 %s34, %s46
      %s286 = ssub.s32 %s35, %s42
      %s287 = sor.u32 %s285, %s286
      %p288 = scmp.eq.s32.totalorder %s287, 0
      %s290 = sadd.s32 %s289, 1
      %s291 = scalar_select %p288, %s289, %s290
      %p294 = pneg %p288
      %p295 = scmp.eq.s32.totalorder %s27, 3
      %p296 = por %p294, %p295
      %p297 = scmp.ne.s32.totalorder %s289, %s292
      %p298 = scmp.eq.s32.totalorder %s27, 0
      %p299 = por %p297, %p298
      %p300 = scmp.ne.s32.totalorder %s289, %s292
      %p301 = scmp.eq.s32.totalorder %s32, 3
      %p302 = por %p300, %p301
      %p303 = scmp.ne.s32.totalorder %s292, %s293
      %p304 = scmp.eq.s32.totalorder %s32, 0
      %p305 = por %p303, %p304
      %p306 = scmp.ne.s32.totalorder %s292, %s293
      %p307 = scmp.eq.s32.totalorder %s33, 3
      %p308 = por %p306, %p307
      %p310 = scmp.ne.s32.totalorder %s293, %s309
      %p311 = scmp.eq.s32.totalorder %s33, 0
      %p312 = por %p310, %p311
      %p313 = scmp.le.s32.totalorder 1, %s27
      %p314 = scmp.lt.s32.totalorder %s27, 5
      %p315 = pnand %p313, %p314
      %p316 = pneg %p315
      // Predicated region
      $region9: #{tpu_custom_call.1} parent=5 // pred_check
        _
      $region10: #{tpu_custom_call.1} parent=5 // pred_check_branch
        %318 = sbr.rel (%p315) target = $region12
      $region11: #{tpu_custom_call.1} parent=5 // pred_region
        %s319 = ssub.s32 %s27, 1
        // Predicated region
        $region13: #{tpu_custom_call.1} parent=11 // pred_check
          %p320 = pneg %p88
        $region14: #{tpu_custom_call.1} parent=11 // pred_check_branch
          %322 = sbr.rel (%p320) target = $region16
        $region15: #{tpu_custom_call.1} parent=11 // pred_region
          _
        $region16: #{tpu_custom_call.1} parent=11 // pred_fallthru
          _
        // Predicated region
        $region17: #{tpu_custom_call.1} parent=11 // pred_check
          %p323 = pneg %p109
        $region18: #{tpu_custom_call.1} parent=11 // pred_check_branch
          %325 = sbr.rel (%p323) target = $region20
        $region19: #{tpu_custom_call.1} parent=11 // pred_region
          _
        $region20: #{tpu_custom_call.1} parent=11 // pred_fallthru
          _
        // Predicated region
        $region21: #{tpu_custom_call.1} parent=11 // pred_check
          %p326 = pneg %p130
        $region22: #{tpu_custom_call.1} parent=11 // pred_check_branch
          %328 = sbr.rel (%p326) target = $region24
        $region23: #{tpu_custom_call.1} parent=11 // pred_region
          _
        $region24: #{tpu_custom_call.1} parent=11 // pred_fallthru
          _
        // Predicated region
        $region25: #{tpu_custom_call.1} parent=11 // pred_check
          %p329 = pneg %p151
        $region26: #{tpu_custom_call.1} parent=11 // pred_check_branch
          %331 = sbr.rel (%p329) target = $region28
        $region27: #{tpu_custom_call.1} parent=11 // pred_region
          _
        $region28: #{tpu_custom_call.1} parent=11 // pred_fallthru
          _
        // Predicated region
        $region29: #{tpu_custom_call.1} parent=11 // pred_check
          %p332 = pneg %p172
        $region30: #{tpu_custom_call.1} parent=11 // pred_check_branch
          %334 = sbr.rel (%p332) target = $region32
        $region31: #{tpu_custom_call.1} parent=11 // pred_region
          _
        $region32: #{tpu_custom_call.1} parent=11 // pred_fallthru
          _
        // Predicated region
        $region33: #{tpu_custom_call.1} parent=11 // pred_check
          %p335 = pneg %p193
        $region34: #{tpu_custom_call.1} parent=11 // pred_check_branch
          %337 = sbr.rel (%p335) target = $region36
        $region35: #{tpu_custom_call.1} parent=11 // pred_region
          _
        $region36: #{tpu_custom_call.1} parent=11 // pred_fallthru
          _
        // Predicated region
        $region37: #{tpu_custom_call.1} parent=11 // pred_check
          %p338 = pneg %p214
        $region38: #{tpu_custom_call.1} parent=11 // pred_check_branch
          %340 = sbr.rel (%p338) target = $region40
        $region39: #{tpu_custom_call.1} parent=11 // pred_region
          _
        $region40: #{tpu_custom_call.1} parent=11 // pred_fallthru
          _
        // Predicated region
        $region41: #{tpu_custom_call.1} parent=11 // pred_check
          %p341 = pneg %p235
        $region42: #{tpu_custom_call.1} parent=11 // pred_check_branch
          %343 = sbr.rel (%p341) target = $region44
        $region43: #{tpu_custom_call.1} parent=11 // pred_region
          _
        $region44: #{tpu_custom_call.1} parent=11 // pred_fallthru
          _
        // Predicated region
        $region45: #{tpu_custom_call.1} parent=11 // pred_check
          %p344 = pneg %p256
        $region46: #{tpu_custom_call.1} parent=11 // pred_check_branch
          %346 = sbr.rel (%p344) target = $region48
        $region47: #{tpu_custom_call.1} parent=11 // pred_region
          _
        $region48: #{tpu_custom_call.1} parent=11 // pred_fallthru
          _
        // Predicated region
        $region49: #{tpu_custom_call.1} parent=11 // pred_check
          %p347 = pneg %p277
        $region50: #{tpu_custom_call.1} parent=11 // pred_check_branch
          %349 = sbr.rel (%p347) target = $region52
        $region51: #{tpu_custom_call.1} parent=11 // pred_region
          _
        $region52: #{tpu_custom_call.1} parent=11 // pred_fallthru
          _
      $region12: #{tpu_custom_call.1} parent=5 // pred_fallthru
        _
      %p350 = scmp.lt.s32.totalorder %s27, 4
      // Predicated region
      $region53: #{tpu_custom_call.1} parent=5 // pred_check
        %p351 = pneg %p350
      $region54: #{tpu_custom_call.1} parent=5 // pred_check_branch
        %353 = sbr.rel (%p351) target = $region56
      $region55: #{tpu_custom_call.1} parent=5 // pred_region
        // Predicated region
        $region57: #{tpu_custom_call.1} parent=55 // pred_check
          %p354 = pneg %p61
        $region58: #{tpu_custom_call.1} parent=55 // pred_check_branch
          %356 = sbr.rel (%p354) target = $region60
        $region59: #{tpu_custom_call.1} parent=55 // pred_region
          %s357 = smul.u32 4, %s35
          %p358 = scmp.lt.s32.totalorder %s34, 1
          %s359 = scalar_select %p358, %s34, 1
          %p360 = scmp.lt.s32.totalorder %s357, 7
          %s361 = scalar_select %p360, %s357, 7
          %s362 = smul.addr %s359, 8
          %s363 = sadd.s32 %s361, %s362
          %s364 = smul.addr %s363, 4
          %s365 = scalar_lea.vmem %s1, %s364
          %s366 = smul.u32 4, %s35
        $region60: #{tpu_custom_call.1} parent=55 // pred_fallthru
          _
      $region56: #{tpu_custom_call.1} parent=5 // pred_fallthru
        _
      %p367 = scmp.le.s32.totalorder 1, %s27
      %p368 = scmp.lt.s32.totalorder %s27, 5
      %p369 = pnand %p367, %p368
      %p370 = pneg %p369
      // Predicated region
      $region61: #{tpu_custom_call.1} parent=5 // pred_check
        _
      $region62: #{tpu_custom_call.1} parent=5 // pred_check_branch
        %372 = sbr.rel (%p369) target = $region64
      $region63: #{tpu_custom_call.1} parent=5 // pred_region
        %s373 = ssub.s32 %s27, 1
        %s374 = smul.u32 4, %s37
        %p375 = scmp.lt.s32.totalorder %s36, 1
        %s376 = scalar_select %p375, %s36, 1
        %p377 = scmp.lt.s32.totalorder %s374, 7
        %s378 = scalar_select %p377, %s374, 7
        %s379 = smul.addr %s376, 8
        %s380 = sadd.s32 %s378, %s379
        %s381 = smul.addr %s380, 4
        %s382 = scalar_lea.vmem %s1, %s381
        %p383 = pneg %p67
        %p384 = pneg %p64
        %p385 = pneg %p88
        %p386 = pneg %p85
        %p387 = pneg %p109
        %p388 = pneg %p106
        %p389 = pneg %p130
        %p390 = pneg %p127
        %p391 = pneg %p151
        %p392 = pneg %p148
        %p393 = pneg %p172
        %p394 = pneg %p169
        %p395 = pneg %p193
        %p396 = pneg %p190
        %p397 = pneg %p214
        %p398 = pneg %p211
        %p399 = pneg %p235
        %p400 = pneg %p232
        %p401 = pneg %p256
        %p402 = pneg %p253
        %p403 = pneg %p277
        %p404 = pneg %p274
        %p405 = pneg %p305
        %p406 = pneg %p302
        %s407 = sand.u32 %s292, 1
        %s408 = scalar_lea.sflag [#allocation5], %s407
        %s409 = sand.u32 %s292, 1
        %s410 = smul.addr %s409, 256
        %s411 = scalar_lea.vmem [#allocation4], %s410
        %s412 = smul.u32 4, %s37
        %p413 = scmp.lt.s32.totalorder %s36, 1
        %s414 = scalar_select %p413, %s36, 1
        %p415 = scmp.lt.s32.totalorder %s412, 7
        %s416 = scalar_select %p415, %s412, 7
        %s417 = smul.addr %s414, 8
        %s418 = sadd.s32 %s416, %s417
        %s419 = smul.addr %s418, 4
        %s420 = scalar_lea.vmem %s1, %s419
        %s421 = smul.u32 4, %s37
        %s422 = smul.u32 4, %s37
        %s424 = smul.u32 %s37, 512
        %s425 = sld [smem:[#allocation3 + %s36]]
        %p426 = scmp.ge.s32.totalorder %s424, %s425
        // Predicated region
        $region65: #{tpu_custom_call.1} parent=63 // pred_check
          %p427 = pneg %p426
        $region66: #{tpu_custom_call.1} parent=63 // pred_check_branch
          %429 = sbr.rel (%p427) target = $region68
        $region67: #{tpu_custom_call.1} parent=63 // pred_region
          %430 = vst [vmem:[%s411] sm:$0xff] 0.0
          %431 = vst [vmem:[%s411 + $0x8] sm:$0xff] 0.0
          %432 = vst [vmem:[%s411 + $0x10] sm:$0xff] 0.0
          %433 = vst [vmem:[%s411 + $0x18] sm:$0xff] 0.0
          %434 = vst [vmem:[%s411 + $0x20] sm:$0xff] 0.0
          %435 = vst [vmem:[%s411 + $0x28] sm:$0xff] 0.0
          %436 = vst [vmem:[%s411 + $0x30] sm:$0xff] 0.0
          %437 = vst [vmem:[%s411 + $0x38] sm:$0xff] 0.0
          %438 = vst [vmem:[%s411 + $0x40] sm:$0xff] 0.0
          %439 = vst [vmem:[%s411 + $0x48] sm:$0xff] 0.0
          %440 = vst [vmem:[%s411 + $0x50] sm:$0xff] 0.0
          %441 = vst [vmem:[%s411 + $0x58] sm:$0xff] 0.0
          %442 = vst [vmem:[%s411 + $0x60] sm:$0xff] 0.0
          %443 = vst [vmem:[%s411 + $0x68] sm:$0xff] 0.0
          %444 = vst [vmem:[%s411 + $0x70] sm:$0xff] 0.0
          %445 = vst [vmem:[%s411 + $0x78] sm:$0xff] 0.0
          %446 = vst [vmem:[%s411 + $0x80] sm:$0xff] 0.0
          %447 = vst [vmem:[%s411 + $0x88] sm:$0xff] 0.0
          %448 = vst [vmem:[%s411 + $0x90] sm:$0xff] 0.0
          %449 = vst [vmem:[%s411 + $0x98] sm:$0xff] 0.0
          %450 = vst [vmem:[%s411 + $0xa0] sm:$0xff] 0.0
          %451 = vst [vmem:[%s411 + $0xa8] sm:$0xff] 0.0
          %452 = vst [vmem:[%s411 + $0xb0] sm:$0xff] 0.0
          %453 = vst [vmem:[%s411 + $0xb8] sm:$0xff] 0.0
          %454 = vst [vmem:[%s411 + $0xc0] sm:$0xff] 0.0
          %455 = vst [vmem:[%s411 + $0xc8] sm:$0xff] 0.0
          %456 = vst [vmem:[%s411 + $0xd0] sm:$0xff] 0.0
          %457 = vst [vmem:[%s411 + $0xd8] sm:$0xff] 0.0
          %458 = vst [vmem:[%s411 + $0xe0] sm:$0xff] 0.0
          %459 = vst [vmem:[%s411 + $0xe8] sm:$0xff] 0.0
          %460 = vst [vmem:[%s411 + $0xf0] sm:$0xff] 0.0
          %461 = vst [vmem:[%s411 + $0xf8] sm:$0xff] 0.0
        $region68: #{tpu_custom_call.1} parent=63 // pred_fallthru
          _
        %p462 = scmp.lt.s32.totalorder %s424, %s425
        // Predicated region
        $region69: #{tpu_custom_call.1} parent=63 // pred_check
          %p463 = pneg %p462
        $region70: #{tpu_custom_call.1} parent=63 // pred_check_branch
          %465 = sbr.rel (%p463) target = $region72
        $region71: #{tpu_custom_call.1} parent=63 // pred_region
          %v466 = vld [vmem:[%s420] sm:$0x77]
          %v467 = vld [vmem:[%s420 + $0x8] sm:$0x77]
          %v468 = vld [vmem:[%s2] sm:$0xf]
          %v469 = vld [vmem:[%s2 + $0x4] sm:$0xf]
          %v470 = vld [vmem:[%s2 + $0x8] sm:$0xf]
          %v471 = vld [vmem:[%s2 + $0xc] sm:$0xf]
          %v472 = vld [vmem:[%s2 + $0x10] sm:$0xf]
          %v473 = vld [vmem:[%s2 + $0x14] sm:$0xf]
          %v474 = vld [vmem:[%s2 + $0x18] sm:$0xf]
          %v475 = vld [vmem:[%s2 + $0x1c] sm:$0xf]
          %v476 = vunpack.c.l.bf16 %v468
          %v477 = vunpack.c.l.bf16 %v469
          %v478 = vunpack.c.l.bf16 %v470
          %v479 = vunpack.c.l.bf16 %v471
          %v480 = vunpack.c.l.bf16 %v472
          %v481 = vunpack.c.l.bf16 %v473
          %v482 = vunpack.c.l.bf16 %v474
          %v483 = vunpack.c.l.bf16 %v475
          %485 = vset.pattern.permute.xlu0 0
          %486 = vperm.xlu0 %485, %v476
          %v487 = vpop.permute.xlu0 %486
          %490 = vset.pattern.permute.xlu0 0
          %491 = vperm.xlu0 %490, %v477
          %v492 = vpop.permute.xlu0 %491
          %495 = vset.pattern.permute.xlu0 0
          %496 = vperm.xlu0 %495, %v478
          %v497 = vpop.permute.xlu0 %496
          %500 = vset.pattern.permute.xlu0 0
          %501 = vperm.xlu0 %500, %v479
          %v502 = vpop.permute.xlu0 %501
          %505 = vset.pattern.permute.xlu0 0
          %506 = vperm.xlu0 %505, %v480
          %v507 = vpop.permute.xlu0 %506
          %510 = vset.pattern.permute.xlu0 0
          %511 = vperm.xlu0 %510, %v481
          %v512 = vpop.permute.xlu0 %511
          %515 = vset.pattern.permute.xlu0 0
          %516 = vperm.xlu0 %515, %v482
          %v517 = vpop.permute.xlu0 %516
          %520 = vset.pattern.permute.xlu0 0
          %521 = vperm.xlu0 %520, %v483
          %v522 = vpop.permute.xlu0 %521
          %v526 = vlaneseq
          %v527 = vshrl.u32 %v526, 7
          %v528 = vsub.s32 0, %v527
          %v529 = vrot.slane %v466, %v528
          %v530 = vlaneseq
          %v531 = vshrl.u32 %v530, 7
          %v532 = vsub.s32 4, %v531
          %v533 = vrot.slane %v466, %v532
          %v534 = vlaneseq
          %v535 = vshrl.u32 %v534, 7
          %v536 = vsub.s32 0, %v535
          %v537 = vrot.slane %v467, %v536
          %v538 = vlaneseq
          %v539 = vshrl.u32 %v538, 7
          %v540 = vsub.s32 4, %v539
          %v541 = vrot.slane %v467, %v540
          %v546 = vlaneseq
          %v547 = vshrl.u32 %v546, 7
          %v548 = vsub.s32 0, %v547
          %v549 = vrot.slane %v529, %v548
          %v550 = vlaneseq
          %v551 = vshrl.u32 %v550, 7
          %v552 = vsub.s32 0, %v551
          %v553 = vrot.slane %v533, %v552
          %v554 = vlaneseq
          %v555 = vshrl.u32 %v554, 7
          %v556 = vsub.s32 0, %v555
          %v557 = vrot.slane %v537, %v556
          %v558 = vlaneseq
          %v559 = vshrl.u32 %v558, 7
          %v560 = vsub.s32 0, %v559
          %v561 = vrot.slane %v541, %v560
          %v562 = vmul.f32 %v487, %v549
          %v563 = vmul.f32 %v487, %v553
          %v564 = vmul.f32 %v487, %v557
          %v565 = vmul.f32 %v487, %v561
          %v566 = vmul.f32 %v492, %v549
          %v567 = vmul.f32 %v492, %v553
          %v568 = vmul.f32 %v492, %v557
          %v569 = vmul.f32 %v492, %v561
          %v570 = vmul.f32 %v497, %v549
          %v571 = vmul.f32 %v497, %v553
          %v572 = vmul.f32 %v497, %v557
          %v573 = vmul.f32 %v497, %v561
          %v574 = vmul.f32 %v502, %v549
          %v575 = vmul.f32 %v502, %v553
          %v576 = vmul.f32 %v502, %v557
          %v577 = vmul.f32 %v502, %v561
          %v578 = vmul.f32 %v507, %v549
          %v579 = vmul.f32 %v507, %v553
          %v580 = vmul.f32 %v507, %v557
          %v581 = vmul.f32 %v507, %v561
          %v582 = vmul.f32 %v512, %v549
          %v583 = vmul.f32 %v512, %v553
          %v584 = vmul.f32 %v512, %v557
          %v585 = vmul.f32 %v512, %v561
          %v586 = vmul.f32 %v517, %v549
          %v587 = vmul.f32 %v517, %v553
          %v588 = vmul.f32 %v517, %v557
          %v589 = vmul.f32 %v517, %v561
          %v590 = vmul.f32 %v522, %v549
          %v591 = vmul.f32 %v522, %v553
          %v592 = vmul.f32 %v522, %v557
          %v593 = vmul.f32 %v522, %v561
          %594 = vset.pattern.permute.xlu0 1
          %595 = vperm.xlu0 %594, %v476
          %v596 = vpop.permute.xlu0 %595
          %598 = vset.pattern.permute.xlu0 1
          %599 = vperm.xlu0 %598, %v477
          %v600 = vpop.permute.xlu0 %599
          %602 = vset.pattern.permute.xlu0 1
          %603 = vperm.xlu0 %602, %v478
          %v604 = vpop.permute.xlu0 %603
          %606 = vset.pattern.permute.xlu0 1
          %607 = vperm.xlu0 %606, %v479
          %v608 = vpop.permute.xlu0 %607
          %610 = vset.pattern.permute.xlu0 1
          %611 = vperm.xlu0 %610, %v480
          %v612 = vpop.permute.xlu0 %611
          %614 = vset.pattern.permute.xlu0 1
          %615 = vperm.xlu0 %614, %v481
          %v616 = vpop.permute.xlu0 %615
          %618 = vset.pattern.permute.xlu0 1
          %619 = vperm.xlu0 %618, %v482
          %v620 = vpop.permute.xlu0 %619
          %622 = vset.pattern.permute.xlu0 1
          %623 = vperm.xlu0 %622, %v483
          %v624 = vpop.permute.xlu0 %623
          %v626 = vlaneseq
          %v627 = vshrl.u32 %v626, 7
          %v628 = vsub.s32 1, %v627
          %v629 = vrot.slane %v466, %v628
          %v630 = vlaneseq
          %v631 = vshrl.u32 %v630, 7
          %v632 = vsub.s32 5, %v631
          %v633 = vrot.slane %v466, %v632
          %v634 = vlaneseq
          %v635 = vshrl.u32 %v634, 7
          %v636 = vsub.s32 1, %v635
          %v637 = vrot.slane %v467, %v636
          %v638 = vlaneseq
          %v639 = vshrl.u32 %v638, 7
          %v640 = vsub.s32 5, %v639
          %v641 = vrot.slane %v467, %v640
          %v646 = vlaneseq
          %v647 = vshrl.u32 %v646, 7
          %v648 = vsub.s32 1, %v647
          %v649 = vrot.slane %v629, %v648
          %v650 = vlaneseq
          %v651 = vshrl.u32 %v650, 7
          %v652 = vsub.s32 1, %v651
          %v653 = vrot.slane %v633, %v652
          %v654 = vlaneseq
          %v655 = vshrl.u32 %v654, 7
          %v656 = vsub.s32 1, %v655
          %v657 = vrot.slane %v637, %v656
          %v658 = vlaneseq
          %v659 = vshrl.u32 %v658, 7
          %v660 = vsub.s32 1, %v659
          %v661 = vrot.slane %v641, %v660
          %v662 = vmul.f32 %v596, %v649
          %v663 = vmul.f32 %v596, %v653
          %v664 = vmul.f32 %v596, %v657
          %v665 = vmul.f32 %v596, %v661
          %v666 = vmul.f32 %v600, %v649
          %v667 = vmul.f32 %v600, %v653
          %v668 = vmul.f32 %v600, %v657
          %v669 = vmul.f32 %v600, %v661
          %v670 = vmul.f32 %v604, %v649
          %v671 = vmul.f32 %v604, %v653
          %v672 = vmul.f32 %v604, %v657
          %v673 = vmul.f32 %v604, %v661
          %v674 = vmul.f32 %v608, %v649
          %v675 = vmul.f32 %v608, %v653
          %v676 = vmul.f32 %v608, %v657
          %v677 = vmul.f32 %v608, %v661
          %v678 = vmul.f32 %v612, %v649
          %v679 = vmul.f32 %v612, %v653
          %v680 = vmul.f32 %v612, %v657
          %v681 = vmul.f32 %v612, %v661
          %v682 = vmul.f32 %v616, %v649
          %v683 = vmul.f32 %v616, %v653
          %v684 = vmul.f32 %v616, %v657
          %v685 = vmul.f32 %v616, %v661
          %v686 = vmul.f32 %v620, %v649
          %v687 = vmul.f32 %v620, %v653
          %v688 = vmul.f32 %v620, %v657
          %v689 = vmul.f32 %v620, %v661
          %v690 = vmul.f32 %v624, %v649
          %v691 = vmul.f32 %v624, %v653
          %v692 = vmul.f32 %v624, %v657
          %v693 = vmul.f32 %v624, %v661
          %v694 = vadd.f32 %v562, %v662
          %v695 = vadd.f32 %v563, %v663
          %v696 = vadd.f32 %v564, %v664
          %v697 = vadd.f32 %v565, %v665
          %v698 = vadd.f32 %v566, %v666
          %v699 = vadd.f32 %v567, %v667
          %v700 = vadd.f32 %v568, %v668
          %v701 = vadd.f32 %v569, %v669
          %v702 = vadd.f32 %v570, %v670
          %v703 = vadd.f32 %v571, %v671
          %v704 = vadd.f32 %v572, %v672
          %v705 = vadd.f32 %v573, %v673
          %v706 = vadd.f32 %v574, %v674
          %v707 = vadd.f32 %v575, %v675
          %v708 = vadd.f32 %v576, %v676
          %v709 = vadd.f32 %v577, %v677
          %v710 = vadd.f32 %v578, %v678
          %v711 = vadd.f32 %v579, %v679
          %v712 = vadd.f32 %v580, %v680
          %v713 = vadd.f32 %v581, %v681
          %v714 = vadd.f32 %v582, %v682
          %v715 = vadd.f32 %v583, %v683
          %v716 = vadd.f32 %v584, %v684
          %v717 = vadd.f32 %v585, %v685
          %v718 = vadd.f32 %v586, %v686
          %v719 = vadd.f32 %v587, %v687
          %v720 = vadd.f32 %v588, %v688
          %v721 = vadd.f32 %v589, %v689
          %v722 = vadd.f32 %v590, %v690
          %v723 = vadd.f32 %v591, %v691
          %v724 = vadd.f32 %v592, %v692
          %v725 = vadd.f32 %v593, %v693
          %726 = vset.pattern.permute.xlu0 2
          %727 = vperm.xlu0 %726, %v476
          %v728 = vpop.permute.xlu0 %727
          %730 = vset.pattern.permute.xlu0 2
          %731 = vperm.xlu0 %730, %v477
          %v732 = vpop.permute.xlu0 %731
          %734 = vset.pattern.permute.xlu0 2
          %735 = vperm.xlu0 %734, %v478
          %v736 = vpop.permute.xlu0 %735
          %738 = vset.pattern.permute.xlu0 2
          %739 = vperm.xlu0 %738, %v479
          %v740 = vpop.permute.xlu0 %739
          %742 = vset.pattern.permute.xlu0 2
          %743 = vperm.xlu0 %742, %v480
          %v744 = vpop.permute.xlu0 %743
          %746 = vset.pattern.permute.xlu0 2
          %747 = vperm.xlu0 %746, %v481
          %v748 = vpop.permute.xlu0 %747
          %750 = vset.pattern.permute.xlu0 2
          %751 = vperm.xlu0 %750, %v482
          %v752 = vpop.permute.xlu0 %751
          %754 = vset.pattern.permute.xlu0 2
          %755 = vperm.xlu0 %754, %v483
          %v756 = vpop.permute.xlu0 %755
          %v758 = vlaneseq
          %v759 = vshrl.u32 %v758, 7
          %v760 = vsub.s32 2, %v759
          %v761 = vrot.slane %v466, %v760
          %v762 = vlaneseq
          %v763 = vshrl.u32 %v762, 7
          %v764 = vsub.s32 6, %v763
          %v765 = vrot.slane %v466, %v764
          %v766 = vlaneseq
          %v767 = vshrl.u32 %v766, 7
          %v768 = vsub.s32 2, %v767
          %v769 = vrot.slane %v467, %v768
          %v770 = vlaneseq
          %v771 = vshrl.u32 %v770, 7
          %v772 = vsub.s32 6, %v771
          %v773 = vrot.slane %v467, %v772
          %v778 = vlaneseq
          %v779 = vshrl.u32 %v778, 7
          %v780 = vsub.s32 2, %v779
          %v781 = vrot.slane %v761, %v780
          %v782 = vlaneseq
          %v783 = vshrl.u32 %v782, 7
          %v784 = vsub.s32 2, %v783
          %v785 = vrot.slane %v765, %v784
          %v786 = vlaneseq
          %v787 = vshrl.u32 %v786, 7
          %v788 = vsub.s32 2, %v787
          %v789 = vrot.slane %v769, %v788
          %v790 = vlaneseq
          %v791 = vshrl.u32 %v790, 7
          %v792 = vsub.s32 2, %v791
          %v793 = vrot.slane %v773, %v792
          %v794 = vmul.f32 %v728, %v781
          %v795 = vmul.f32 %v728, %v785
          %v796 = vmul.f32 %v728, %v789
          %v797 = vmul.f32 %v728, %v793
          %v798 = vmul.f32 %v732, %v781
          %v799 = vmul.f32 %v732, %v785
          %v800 = vmul.f32 %v732, %v789
          %v801 = vmul.f32 %v732, %v793
          %v802 = vmul.f32 %v736, %v781
          %v803 = vmul.f32 %v736, %v785
          %v804 = vmul.f32 %v736, %v789
          %v805 = vmul.f32 %v736, %v793
          %v806 = vmul.f32 %v740, %v781
          %v807 = vmul.f32 %v740, %v785
          %v808 = vmul.f32 %v740, %v789
          %v809 = vmul.f32 %v740, %v793
          %v810 = vmul.f32 %v744, %v781
          %v811 = vmul.f32 %v744, %v785
          %v812 = vmul.f32 %v744, %v789
          %v813 = vmul.f32 %v744, %v793
          %v814 = vmul.f32 %v748, %v781
          %v815 = vmul.f32 %v748, %v785
          %v816 = vmul.f32 %v748, %v789
          %v817 = vmul.f32 %v748, %v793
          %v818 = vmul.f32 %v752, %v781
          %v819 = vmul.f32 %v752, %v785
          %v820 = vmul.f32 %v752, %v789
          %v821 = vmul.f32 %v752, %v793
          %v822 = vmul.f32 %v756, %v781
          %v823 = vmul.f32 %v756, %v785
          %v824 = vmul.f32 %v756, %v789
          %v825 = vmul.f32 %v756, %v793
          %v826 = vadd.f32 %v694, %v794
          %v827 = vadd.f32 %v695, %v795
          %v828 = vadd.f32 %v696, %v796
          %v829 = vadd.f32 %v697, %v797
          %v830 = vadd.f32 %v698, %v798
          %v831 = vadd.f32 %v699, %v799
          %v832 = vadd.f32 %v700, %v800
          %v833 = vadd.f32 %v701, %v801
          %v834 = vadd.f32 %v702, %v802
          %v835 = vadd.f32 %v703, %v803
          %v836 = vadd.f32 %v704, %v804
          %v837 = vadd.f32 %v705, %v805
          %v838 = vadd.f32 %v706, %v806
          %v839 = vadd.f32 %v707, %v807
          %v840 = vadd.f32 %v708, %v808
          %v841 = vadd.f32 %v709, %v809
          %v842 = vadd.f32 %v710, %v810
          %v843 = vadd.f32 %v711, %v811
          %v844 = vadd.f32 %v712, %v812
          %v845 = vadd.f32 %v713, %v813
          %v846 = vadd.f32 %v714, %v814
          %v847 = vadd.f32 %v715, %v815
          %v848 = vadd.f32 %v716, %v816
          %v849 = vadd.f32 %v717, %v817
          %v850 = vadd.f32 %v718, %v818
          %v851 = vadd.f32 %v719, %v819
          %v852 = vadd.f32 %v720, %v820
          %v853 = vadd.f32 %v721, %v821
          %v854 = vadd.f32 %v722, %v822
          %v855 = vadd.f32 %v723, %v823
          %v856 = vadd.f32 %v724, %v824
          %v857 = vadd.f32 %v725, %v825
          %v858 = vld [vmem:[%s7] sm:$0xff]
          %v859 = vld [vmem:[%s7 + $0x8] sm:$0xff]
          %v860 = vld [vmem:[%s7 + $0x10] sm:$0xff]
          %v861 = vld [vmem:[%s7 + $0x18] sm:$0xff]
          %v862 = vld [vmem:[%s7 + $0x20] sm:$0xff]
          %v863 = vld [vmem:[%s7 + $0x28] sm:$0xff]
          %v864 = vld [vmem:[%s7 + $0x30] sm:$0xff]
          %v865 = vld [vmem:[%s7 + $0x38] sm:$0xff]
          %867 = vset.pattern.permute.xlu0 0
          %868 = vperm.xlu0 %867, %v858
          %v869 = vpop.permute.xlu0 %868
          %872 = vset.pattern.permute.xlu0 0
          %873 = vperm.xlu0 %872, %v859
          %v874 = vpop.permute.xlu0 %873
          %877 = vset.pattern.permute.xlu0 0
          %878 = vperm.xlu0 %877, %v860
          %v879 = vpop.permute.xlu0 %878
          %882 = vset.pattern.permute.xlu0 0
          %883 = vperm.xlu0 %882, %v861
          %v884 = vpop.permute.xlu0 %883
          %887 = vset.pattern.permute.xlu0 0
          %888 = vperm.xlu0 %887, %v862
          %v889 = vpop.permute.xlu0 %888
          %892 = vset.pattern.permute.xlu0 0
          %893 = vperm.xlu0 %892, %v863
          %v894 = vpop.permute.xlu0 %893
          %897 = vset.pattern.permute.xlu0 0
          %898 = vperm.xlu0 %897, %v864
          %v899 = vpop.permute.xlu0 %898
          %902 = vset.pattern.permute.xlu0 0
          %903 = vperm.xlu0 %902, %v865
          %v904 = vpop.permute.xlu0 %903
          %v906 = vadd.f32 %v826, %v869
          %v907 = vadd.f32 %v827, %v869
          %v908 = vadd.f32 %v828, %v869
          %v909 = vadd.f32 %v829, %v869
          %v910 = vadd.f32 %v830, %v874
          %v911 = vadd.f32 %v831, %v874
          %v912 = vadd.f32 %v832, %v874
          %v913 = vadd.f32 %v833, %v874
          %v914 = vadd.f32 %v834, %v879
          %v915 = vadd.f32 %v835, %v879
          %v916 = vadd.f32 %v836, %v879
          %v917 = vadd.f32 %v837, %v879
          %v918 = vadd.f32 %v838, %v884
          %v919 = vadd.f32 %v839, %v884
          %v920 = vadd.f32 %v840, %v884
          %v921 = vadd.f32 %v841, %v884
          %v922 = vadd.f32 %v842, %v889
          %v923 = vadd.f32 %v843, %v889
          %v924 = vadd.f32 %v844, %v889
          %v925 = vadd.f32 %v845, %v889
          %v926 = vadd.f32 %v846, %v894
          %v927 = vadd.f32 %v847, %v894
          %v928 = vadd.f32 %v848, %v894
          %v929 = vadd.f32 %v849, %v894
          %v930 = vadd.f32 %v850, %v899
          %v931 = vadd.f32 %v851, %v899
          %v932 = vadd.f32 %v852, %v899
          %v933 = vadd.f32 %v853, %v899
          %v934 = vadd.f32 %v854, %v904
          %v935 = vadd.f32 %v855, %v904
          %v936 = vadd.f32 %v856, %v904
          %v937 = vadd.f32 %v857, %v904
          %v938 = vmax.f32 %v906, 0.0
          %v939 = vmax.f32 %v907, 0.0
          %v940 = vmax.f32 %v908, 0.0
          %v941 = vmax.f32 %v909, 0.0
          %v942 = vmax.f32 %v910, 0.0
          %v943 = vmax.f32 %v911, 0.0
          %v944 = vmax.f32 %v912, 0.0
          %v945 = vmax.f32 %v913, 0.0
          %v946 = vmax.f32 %v914, 0.0
          %v947 = vmax.f32 %v915, 0.0
          %v948 = vmax.f32 %v916, 0.0
          %v949 = vmax.f32 %v917, 0.0
          %v950 = vmax.f32 %v918, 0.0
          %v951 = vmax.f32 %v919, 0.0
          %v952 = vmax.f32 %v920, 0.0
          %v953 = vmax.f32 %v921, 0.0
          %v954 = vmax.f32 %v922, 0.0
          %v955 = vmax.f32 %v923, 0.0
          %v956 = vmax.f32 %v924, 0.0
          %v957 = vmax.f32 %v925, 0.0
          %v958 = vmax.f32 %v926, 0.0
          %v959 = vmax.f32 %v927, 0.0
          %v960 = vmax.f32 %v928, 0.0
          %v961 = vmax.f32 %v929, 0.0
          %v962 = vmax.f32 %v930, 0.0
          %v963 = vmax.f32 %v931, 0.0
          %v964 = vmax.f32 %v932, 0.0
          %v965 = vmax.f32 %v933, 0.0
          %v966 = vmax.f32 %v934, 0.0
          %v967 = vmax.f32 %v935, 0.0
          %v968 = vmax.f32 %v936, 0.0
          %v969 = vmax.f32 %v937, 0.0
          %v970 = vpack.c.bf16 %v942, %v938
          %v971 = vpack.c.bf16 %v943, %v939
          %v972 = vpack.c.bf16 %v944, %v940
          %v973 = vpack.c.bf16 %v945, %v941
          %v974 = vpack.c.bf16 %v950, %v946
          %v975 = vpack.c.bf16 %v951, %v947
          %v976 = vpack.c.bf16 %v952, %v948
          %v977 = vpack.c.bf16 %v953, %v949
          %v978 = vpack.c.bf16 %v958, %v954
          %v979 = vpack.c.bf16 %v959, %v955
          %v980 = vpack.c.bf16 %v960, %v956
          %v981 = vpack.c.bf16 %v961, %v957
          %v982 = vpack.c.bf16 %v966, %v962
          %v983 = vpack.c.bf16 %v967, %v963
          %v984 = vpack.c.bf16 %v968, %v964
          %v985 = vpack.c.bf16 %v969, %v965
          %v986 = vld [vmem:[%s3] sm:$0xf]
          %v987 = vld [vmem:[%s3 + $0x4] sm:$0xf]
          %v988 = vld [vmem:[%s3 + $0x8] sm:$0xf]
          %v989 = vld [vmem:[%s3 + $0xc] sm:$0xf]
          %v990 = vld [vmem:[%s3 + $0x10] sm:$0xf]
          %v991 = vld [vmem:[%s3 + $0x14] sm:$0xf]
          %v992 = vld [vmem:[%s3 + $0x18] sm:$0xf]
          %v993 = vld [vmem:[%s3 + $0x1c] sm:$0xf]
          %v994 = vld [vmem:[%s8] sm:$0xff]
          %v995 = vld [vmem:[%s8 + $0x8] sm:$0xff]
          %v996 = vld [vmem:[%s8 + $0x10] sm:$0xff]
          %v997 = vld [vmem:[%s8 + $0x18] sm:$0xff]
          %v998 = vld [vmem:[%s8 + $0x20] sm:$0xff]
          %v999 = vld [vmem:[%s8 + $0x28] sm:$0xff]
          %v1000 = vld [vmem:[%s8 + $0x30] sm:$0xff]
          %v1001 = vld [vmem:[%s8 + $0x38] sm:$0xff]
          %1003 = vset.pattern.permute.xlu0 0
          %1004 = vperm.xlu0 %1003, %v994
          %v1005 = vpop.permute.xlu0 %1004
          %1008 = vset.pattern.permute.xlu0 0
          %1009 = vperm.xlu0 %1008, %v995
          %v1010 = vpop.permute.xlu0 %1009
          %1013 = vset.pattern.permute.xlu0 0
          %1014 = vperm.xlu0 %1013, %v996
          %v1015 = vpop.permute.xlu0 %1014
          %1018 = vset.pattern.permute.xlu0 0
          %1019 = vperm.xlu0 %1018, %v997
          %v1020 = vpop.permute.xlu0 %1019
          %1023 = vset.pattern.permute.xlu0 0
          %1024 = vperm.xlu0 %1023, %v998
          %v1025 = vpop.permute.xlu0 %1024
          %1028 = vset.pattern.permute.xlu0 0
          %1029 = vperm.xlu0 %1028, %v999
          %v1030 = vpop.permute.xlu0 %1029
          %1033 = vset.pattern.permute.xlu0 0
          %1034 = vperm.xlu0 %1033, %v1000
          %v1035 = vpop.permute.xlu0 %1034
          %1038 = vset.pattern.permute.xlu0 0
          %1039 = vperm.xlu0 %1038, %v1001
          %v1040 = vpop.permute.xlu0 %1039
          %v1050 = vunpack.c.l.b16 %v986
          %v1051 = vunpack.c.l.b16 %v987
          %v1052 = vunpack.c.l.b16 %v988
          %v1053 = vunpack.c.l.b16 %v989
          %v1054 = vunpack.c.l.b16 %v990
          %v1055 = vunpack.c.l.b16 %v991
          %v1056 = vunpack.c.l.b16 %v992
          %v1057 = vunpack.c.l.b16 %v993
          %v1058 = vpack.c.b16 %v1051, %v1050
          %v1059 = vpack.c.b16 %v1053, %v1052
          %v1060 = vpack.c.b16 %v1055, %v1054
          %v1061 = vpack.c.b16 %v1057, %v1056
          %vm1062 = vcmask 523264
          %v1064 = vsel %vm1062, %v1058, 0
          %v1067 = vsel %vm1062, %v1059, 0
          %v1070 = vsel %vm1062, %v1060, 0
          %v1073 = vsel %vm1062, %v1061, 0
          %1075 = vmatprep.subr.bf16.mxu0 %v971
          %1076 = vmatpush1.bf16.msra.mxu0 %v970
          %1077 = vmatprep.subr.bf16.mxu0 %v975
          %1078 = vmatpush1.bf16.msra.mxu0 %v974
          %1079 = vmatprep.subr.bf16.mxu0 %v979
          %1080 = vmatpush1.bf16.msra.mxu0 %v978
          %1081 = vmatprep.subr.bf16.mxu0 %v983
          %1082 = vmatpush1.bf16.msra.mxu0 %v982
          %1083 = vmatprep.subr.bf16.mxu0 0
          %1084 = vmatpush1.bf16.msra.mxu0 0
          %1085 = vmatprep.subr.bf16.mxu0 0
          %1086 = vmatpush1.bf16.msra.mxu0 0
          %1087 = vmatprep.subr.bf16.mxu0 0
          %1088 = vmatpush1.bf16.msra.mxu0 0
          %1089 = vmatprep.subr.bf16.mxu0 0
          %1090 = vmatpush1.bf16.msra.mxu0 0
          %1091 = vmatprep.subr.bf16.mxu0 0
          %1092 = vmatpush1.bf16.msra.mxu0 0
          %1093 = vmatprep.subr.bf16.mxu0 0
          %1094 = vmatpush1.bf16.msra.mxu0 0
          %1095 = vmatprep.subr.bf16.mxu0 0
          %1096 = vmatpush1.bf16.msra.mxu0 0
          %1097 = vmatprep.subr.bf16.mxu0 0
          %1098 = vmatpush1.bf16.msra.mxu0 0
          %1099 = vmatprep.subr.bf16.mxu0 0
          %1100 = vmatpush1.bf16.msra.mxu0 0
          %1101 = vmatprep.subr.bf16.mxu0 0
          %1102 = vmatpush1.bf16.msra.mxu0 0
          %1103 = vmatprep.subr.bf16.mxu0 0
          %1104 = vmatpush1.bf16.msra.mxu0 0
          %1105 = vmatprep.subr.bf16.mxu0 0
          %1106 = vmatpush1.bf16.msra.mxu0 0
          %1107 = vmatprep.mubr.bf16.mxu0 0
          %1108 = vmatmul.mubr.bf16.gmra.mrb[0].mxu0 %v1064
          %v1109 = vpop.f32.mrb[0].mxu0
          %v1110 = vadd.f32 %v1005, %v1109
          %v1111 = vpop.f32.mrb[0].mxu0
          %v1112 = vadd.f32 %v1005, %v1111
          %v1113 = vpop.f32.mrb[0].mxu0
          %v1114 = vadd.f32 %v1010, %v1113
          %v1115 = vpop.f32.mrb[0].mxu0
          %v1116 = vadd.f32 %v1010, %v1115
          %1117 = vmatprep.mubr.bf16.mxu0 0
          %1118 = vmatmul.mubr.bf16.gmra.mrb[0].mxu0 %v1067
          %v1119 = vpop.f32.mrb[0].mxu0
          %v1120 = vadd.f32 %v1015, %v1119
          %v1121 = vpop.f32.mrb[0].mxu0
          %v1122 = vadd.f32 %v1015, %v1121
          %v1123 = vpop.f32.mrb[0].mxu0
          %v1124 = vadd.f32 %v1020, %v1123
          %v1125 = vpop.f32.mrb[0].mxu0
          %v1126 = vadd.f32 %v1020, %v1125
          %1127 = vmatprep.mubr.bf16.mxu0 0
          %1128 = vmatmul.mubr.bf16.gmra.mrb[0].mxu0 %v1070
          %v1129 = vpop.f32.mrb[0].mxu0
          %v1130 = vadd.f32 %v1025, %v1129
          %v1131 = vpop.f32.mrb[0].mxu0
          %v1132 = vadd.f32 %v1025, %v1131
          %v1133 = vpop.f32.mrb[0].mxu0
          %v1134 = vadd.f32 %v1030, %v1133
          %v1135 = vpop.f32.mrb[0].mxu0
          %v1136 = vadd.f32 %v1030, %v1135
          %1137 = vmatprep.mubr.bf16.mxu0 0
          %1138 = vmatmul.mubr.bf16.gmra.mrb[0].mxu0 %v1073
          %v1139 = vpop.f32.mrb[0].mxu0
          %v1140 = vadd.f32 %v1035, %v1139
          %v1141 = vpop.f32.mrb[0].mxu0
          %v1142 = vadd.f32 %v1035, %v1141
          %v1143 = vpop.f32.mrb[0].mxu0
          %v1144 = vadd.f32 %v1040, %v1143
          %v1145 = vpop.f32.mrb[0].mxu0
          %v1146 = vadd.f32 %v1040, %v1145
          %1147 = vdwg.mxu0
          %1148 = vmatprep.subr.bf16.mxu0 %v973
          %1149 = vmatpush1.bf16.msra.mxu0 %v972
          %1150 = vmatprep.subr.bf16.mxu0 %v977
          %1151 = vmatpush1.bf16.msra.mxu0 %v976
          %1152 = vmatprep.subr.bf16.mxu0 %v981
          %1153 = vmatpush1.bf16.msra.mxu0 %v980
          %1154 = vmatprep.subr.bf16.mxu0 %v985
          %1155 = vmatpush1.bf16.msra.mxu0 %v984
          %1156 = vmatprep.subr.bf16.mxu0 0
          %1157 = vmatpush1.bf16.msra.mxu0 0
          %1158 = vmatprep.subr.bf16.mxu0 0
          %1159 = vmatpush1.bf16.msra.mxu0 0
          %1160 = vmatprep.subr.bf16.mxu0 0
          %1161 = vmatpush1.bf16.msra.mxu0 0
          %1162 = vmatprep.subr.bf16.mxu0 0
          %1163 = vmatpush1.bf16.msra.mxu0 0
          %1164 = vmatprep.subr.bf16.mxu0 0
          %1165 = vmatpush1.bf16.msra.mxu0 0
          %1166 = vmatprep.subr.bf16.mxu0 0
          %1167 = vmatpush1.bf16.msra.mxu0 0
          %1168 = vmatprep.subr.bf16.mxu0 0
          %1169 = vmatpush1.bf16.msra.mxu0 0
          %1170 = vmatprep.subr.bf16.mxu0 0
          %1171 = vmatpush1.bf16.msra.mxu0 0
          %1172 = vmatprep.subr.bf16.mxu0 0
          %1173 = vmatpush1.bf16.msra.mxu0 0
          %1174 = vmatprep.subr.bf16.mxu0 0
          %1175 = vmatpush1.bf16.msra.mxu0 0
          %1176 = vmatprep.subr.bf16.mxu0 0
          %1177 = vmatpush1.bf16.msra.mxu0 0
          %1178 = vmatprep.subr.bf16.mxu0 0
          %1179 = vmatpush1.bf16.msra.mxu0 0
          %1180 = vmatprep.mubr.bf16.mxu0 0
          %1181 = vmatmul.mubr.bf16.gmra.mrb[0].mxu0 %v1064
          %v1182 = vpop.f32.mrb[0].mxu0
          %v1183 = vadd.f32 %v1005, %v1182
          %v1184 = vpop.f32.mrb[0].mxu0
          %v1185 = vadd.f32 %v1005, %v1184
          %v1186 = vpop.f32.mrb[0].mxu0
          %v1187 = vadd.f32 %v1010, %v1186
          %v1188 = vpop.f32.mrb[0].mxu0
          %v1189 = vadd.f32 %v1010, %v1188
          %1190 = vmatprep.mubr.bf16.mxu0 0
          %1191 = vmatmul.mubr.bf16.gmra.mrb[0].mxu0 %v1067
          %v1192 = vpop.f32.mrb[0].mxu0
          %v1193 = vadd.f32 %v1015, %v1192
          %v1194 = vpop.f32.mrb[0].mxu0
          %v1195 = vadd.f32 %v1015, %v1194
          %v1196 = vpop.f32.mrb[0].mxu0
          %v1197 = vadd.f32 %v1020, %v1196
          %v1198 = vpop.f32.mrb[0].mxu0
          %v1199 = vadd.f32 %v1020, %v1198
          %1200 = vmatprep.mubr.bf16.mxu0 0
          %1201 = vmatmul.mubr.bf16.gmra.mrb[0].mxu0 %v1070
          %v1202 = vpop.f32.mrb[0].mxu0
          %v1203 = vadd.f32 %v1025, %v1202
          %v1204 = vpop.f32.mrb[0].mxu0
          %v1205 = vadd.f32 %v1025, %v1204
          %v1206 = vpop.f32.mrb[0].mxu0
          %v1207 = vadd.f32 %v1030, %v1206
          %v1208 = vpop.f32.mrb[0].mxu0
          %v1209 = vadd.f32 %v1030, %v1208
          %1210 = vmatprep.mubr.bf16.mxu0 0
          %1211 = vmatmul.mubr.bf16.gmra.mrb[0].mxu0 %v1073
          %v1212 = vpop.f32.mrb[0].mxu0
          %v1213 = vadd.f32 %v1035, %v1212
          %v1214 = vpop.f32.mrb[0].mxu0
          %v1215 = vadd.f32 %v1035, %v1214
          %v1216 = vpop.f32.mrb[0].mxu0
          %v1217 = vadd.f32 %v1040, %v1216
          %v1218 = vpop.f32.mrb[0].mxu0
          %v1219 = vadd.f32 %v1040, %v1218
          %1220 = vdwg.mxu0
          %v1221 = vmax.f32 %v1110, 0.0
          %v1222 = vmax.f32 %v1112, 0.0
          %v1223 = vmax.f32 %v1183, 0.0
          %v1224 = vmax.f32 %v1185, 0.0
          %v1225 = vmax.f32 %v1114, 0.0
          %v1226 = vmax.f32 %v1116, 0.0
          %v1227 = vmax.f32 %v1187, 0.0
          %v1228 = vmax.f32 %v1189, 0.0
          %v1229 = vmax.f32 %v1120, 0.0
          %v1230 = vmax.f32 %v1122, 0.0
          %v1231 = vmax.f32 %v1193, 0.0
          %v1232 = vmax.f32 %v1195, 0.0
          %v1233 = vmax.f32 %v1124, 0.0
          %v1234 = vmax.f32 %v1126, 0.0
          %v1235 = vmax.f32 %v1197, 0.0
          %v1236 = vmax.f32 %v1199, 0.0
          %v1237 = vmax.f32 %v1130, 0.0
          %v1238 = vmax.f32 %v1132, 0.0
          %v1239 = vmax.f32 %v1203, 0.0
          %v1240 = vmax.f32 %v1205, 0.0
          %v1241 = vmax.f32 %v1134, 0.0
          %v1242 = vmax.f32 %v1136, 0.0
          %v1243 = vmax.f32 %v1207, 0.0
          %v1244 = vmax.f32 %v1209, 0.0
          %v1245 = vmax.f32 %v1140, 0.0
          %v1246 = vmax.f32 %v1142, 0.0
          %v1247 = vmax.f32 %v1213, 0.0
          %v1248 = vmax.f32 %v1215, 0.0
          %v1249 = vmax.f32 %v1144, 0.0
          %v1250 = vmax.f32 %v1146, 0.0
          %v1251 = vmax.f32 %v1217, 0.0
          %v1252 = vmax.f32 %v1219, 0.0
          %v1253 = vpack.c.bf16 %v1225, %v1221
          %v1254 = vpack.c.bf16 %v1226, %v1222
          %v1255 = vpack.c.bf16 %v1227, %v1223
          %v1256 = vpack.c.bf16 %v1228, %v1224
          %v1257 = vpack.c.bf16 %v1233, %v1229
          %v1258 = vpack.c.bf16 %v1234, %v1230
          %v1259 = vpack.c.bf16 %v1235, %v1231
          %v1260 = vpack.c.bf16 %v1236, %v1232
          %v1261 = vpack.c.bf16 %v1241, %v1237
          %v1262 = vpack.c.bf16 %v1242, %v1238
          %v1263 = vpack.c.bf16 %v1243, %v1239
          %v1264 = vpack.c.bf16 %v1244, %v1240
          %v1265 = vpack.c.bf16 %v1249, %v1245
          %v1266 = vpack.c.bf16 %v1250, %v1246
          %v1267 = vpack.c.bf16 %v1251, %v1247
          %v1268 = vpack.c.bf16 %v1252, %v1248
          %v1269 = vld [vmem:[%s4] sm:$0xf]
          %v1270 = vld [vmem:[%s4 + $0x4] sm:$0xf]
          %v1271 = vld [vmem:[%s4 + $0x8] sm:$0xf]
          %v1272 = vld [vmem:[%s4 + $0xc] sm:$0xf]
          %v1273 = vld [vmem:[%s4 + $0x10] sm:$0xf]
          %v1274 = vld [vmem:[%s4 + $0x14] sm:$0xf]
          %v1275 = vld [vmem:[%s4 + $0x18] sm:$0xf]
          %v1276 = vld [vmem:[%s4 + $0x1c] sm:$0xf]
          %v1277 = vld [vmem:[%s9] sm:$0xff]
          %v1278 = vld [vmem:[%s9 + $0x8] sm:$0xff]
          %v1279 = vld [vmem:[%s9 + $0x10] sm:$0xff]
          %v1280 = vld [vmem:[%s9 + $0x18] sm:$0xff]
          %v1281 = vld [vmem:[%s9 + $0x20] sm:$0xff]
          %v1282 = vld [vmem:[%s9 + $0x28] sm:$0xff]
          %v1283 = vld [vmem:[%s9 + $0x30] sm:$0xff]
          %v1284 = vld [vmem:[%s9 + $0x38] sm:$0xff]
          %1286 = vset.pattern.permute.xlu0 0
          %1287 = vperm.xlu0 %1286, %v1277
          %v1288 = vpop.permute.xlu0 %1287
          %1291 = vset.pattern.permute.xlu0 0
          %1292 = vperm.xlu0 %1291, %v1278
          %v1293 = vpop.permute.xlu0 %1292
          %1296 = vset.pattern.permute.xlu0 0
          %1297 = vperm.xlu0 %1296, %v1279
          %v1298 = vpop.permute.xlu0 %1297
          %1301 = vset.pattern.permute.xlu0 0
          %1302 = vperm.xlu0 %1301, %v1280
          %v1303 = vpop.permute.xlu0 %1302
          %1306 = vset.pattern.permute.xlu0 0
          %1307 = vperm.xlu0 %1306, %v1281
          %v1308 = vpop.permute.xlu0 %1307
          %1311 = vset.pattern.permute.xlu0 0
          %1312 = vperm.xlu0 %1311, %v1282
          %v1313 = vpop.permute.xlu0 %1312
          %1316 = vset.pattern.permute.xlu0 0
          %1317 = vperm.xlu0 %1316, %v1283
          %v1318 = vpop.permute.xlu0 %1317
          %1321 = vset.pattern.permute.xlu0 0
          %1322 = vperm.xlu0 %1321, %v1284
          %v1323 = vpop.permute.xlu0 %1322
          %v1333 = vunpack.c.l.b16 %v1269
          %v1334 = vunpack.c.l.b16 %v1270
          %v1335 = vunpack.c.l.b16 %v1271
          %v1336 = vunpack.c.l.b16 %v1272
          %v1337 = vunpack.c.l.b16 %v1273
          %v1338 = vunpack.c.l.b16 %v1274
          %v1339 = vunpack.c.l.b16 %v1275
          %v1340 = vunpack.c.l.b16 %v1276
          %v1341 = vpack.c.b16 %v1334, %v1333
          %v1342 = vpack.c.b16 %v1336, %v1335
          %v1343 = vpack.c.b16 %v1338, %v1337
          %v1344 = vpack.c.b16 %v1340, %v1339
          %v1346 = vsel %vm1062, %v1341, 0
          %v1349 = vsel %vm1062, %v1342, 0
          %v1352 = vsel %vm1062, %v1343, 0
          %v1355 = vsel %vm1062, %v1344, 0
          %1357 = vmatprep.subr.bf16.mxu0 %v1254
          %1358 = vmatpush1.bf16.msra.mxu0 %v1253
          %1359 = vmatprep.subr.bf16.mxu0 %v1258
          %1360 = vmatpush1.bf16.msra.mxu0 %v1257
          %1361 = vmatprep.subr.bf16.mxu0 %v1262
          %1362 = vmatpush1.bf16.msra.mxu0 %v1261
          %1363 = vmatprep.subr.bf16.mxu0 %v1266
          %1364 = vmatpush1.bf16.msra.mxu0 %v1265
          %1365 = vmatprep.subr.bf16.mxu0 0
          %1366 = vmatpush1.bf16.msra.mxu0 0
          %1367 = vmatprep.subr.bf16.mxu0 0
          %1368 = vmatpush1.bf16.msra.mxu0 0
          %1369 = vmatprep.subr.bf16.mxu0 0
          %1370 = vmatpush1.bf16.msra.mxu0 0
          %1371 = vmatprep.subr.bf16.mxu0 0
          %1372 = vmatpush1.bf16.msra.mxu0 0
          %1373 = vmatprep.subr.bf16.mxu0 0
          %1374 = vmatpush1.bf16.msra.mxu0 0
          %1375 = vmatprep.subr.bf16.mxu0 0
          %1376 = vmatpush1.bf16.msra.mxu0 0
          %1377 = vmatprep.subr.bf16.mxu0 0
          %1378 = vmatpush1.bf16.msra.mxu0 0
          %1379 = vmatprep.subr.bf16.mxu0 0
          %1380 = vmatpush1.bf16.msra.mxu0 0
          %1381 = vmatprep.subr.bf16.mxu0 0
          %1382 = vmatpush1.bf16.msra.mxu0 0
          %1383 = vmatprep.subr.bf16.mxu0 0
          %1384 = vmatpush1.bf16.msra.mxu0 0
          %1385 = vmatprep.subr.bf16.mxu0 0
          %1386 = vmatpush1.bf16.msra.mxu0 0
          %1387 = vmatprep.subr.bf16.mxu0 0
          %1388 = vmatpush1.bf16.msra.mxu0 0
          %1389 = vmatprep.mubr.bf16.mxu0 0
          %1390 = vmatmul.mubr.bf16.gmra.mrb[0].mxu0 %v1346
          %v1391 = vpop.f32.mrb[0].mxu0
          %v1392 = vadd.f32 %v1288, %v1391
          %v1393 = vpop.f32.mrb[0].mxu0
          %v1394 = vadd.f32 %v1288, %v1393
          %v1395 = vpop.f32.mrb[0].mxu0
          %v1396 = vadd.f32 %v1293, %v1395
          %v1397 = vpop.f32.mrb[0].mxu0
          %v1398 = vadd.f32 %v1293, %v1397
          %1399 = vmatprep.mubr.bf16.mxu0 0
          %1400 = vmatmul.mubr.bf16.gmra.mrb[0].mxu0 %v1349
          %v1401 = vpop.f32.mrb[0].mxu0
          %v1402 = vadd.f32 %v1298, %v1401
          %v1403 = vpop.f32.mrb[0].mxu0
          %v1404 = vadd.f32 %v1298, %v1403
          %v1405 = vpop.f32.mrb[0].mxu0
          %v1406 = vadd.f32 %v1303, %v1405
          %v1407 = vpop.f32.mrb[0].mxu0
          %v1408 = vadd.f32 %v1303, %v1407
          %1409 = vmatprep.mubr.bf16.mxu0 0
          %1410 = vmatmul.mubr.bf16.gmra.mrb[0].mxu0 %v1352
          %v1411 = vpop.f32.mrb[0].mxu0
          %v1412 = vadd.f32 %v1308, %v1411
          %v1413 = vpop.f32.mrb[0].mxu0
          %v1414 = vadd.f32 %v1308, %v1413
          %v1415 = vpop.f32.mrb[0].mxu0
          %v1416 = vadd.f32 %v1313, %v1415
          %v1417 = vpop.f32.mrb[0].mxu0
          %v1418 = vadd.f32 %v1313, %v1417
          %1419 = vmatprep.mubr.bf16.mxu0 0
          %1420 = vmatmul.mubr.bf16.gmra.mrb[0].mxu0 %v1355
          %v1421 = vpop.f32.mrb[0].mxu0
          %v1422 = vadd.f32 %v1318, %v1421
          %v1423 = vpop.f32.mrb[0].mxu0
          %v1424 = vadd.f32 %v1318, %v1423
          %v1425 = vpop.f32.mrb[0].mxu0
          %v1426 = vadd.f32 %v1323, %v1425
          %v1427 = vpop.f32.mrb[0].mxu0
          %v1428 = vadd.f32 %v1323, %v1427
          %1429 = vdwg.mxu0
          %1430 = vmatprep.subr.bf16.mxu0 %v1256
          %1431 = vmatpush1.bf16.msra.mxu0 %v1255
          %1432 = vmatprep.subr.bf16.mxu0 %v1260
          %1433 = vmatpush1.bf16.msra.mxu0 %v1259
          %1434 = vmatprep.subr.bf16.mxu0 %v1264
          %1435 = vmatpush1.bf16.msra.mxu0 %v1263
          %1436 = vmatprep.subr.bf16.mxu0 %v1268
          %1437 = vmatpush1.bf16.msra.mxu0 %v1267
          %1438 = vmatprep.subr.bf16.mxu0 0
          %1439 = vmatpush1.bf16.msra.mxu0 0
          %1440 = vmatprep.subr.bf16.mxu0 0
          %1441 = vmatpush1.bf16.msra.mxu0 0
          %1442 = vmatprep.subr.bf16.mxu0 0
          %1443 = vmatpush1.bf16.msra.mxu0 0
          %1444 = vmatprep.subr.bf16.mxu0 0
          %1445 = vmatpush1.bf16.msra.mxu0 0
          %1446 = vmatprep.subr.bf16.mxu0 0
          %1447 = vmatpush1.bf16.msra.mxu0 0
          %1448 = vmatprep.subr.bf16.mxu0 0
          %1449 = vmatpush1.bf16.msra.mxu0 0
          %1450 = vmatprep.subr.bf16.mxu0 0
          %1451 = vmatpush1.bf16.msra.mxu0 0
          %1452 = vmatprep.subr.bf16.mxu0 0
          %1453 = vmatpush1.bf16.msra.mxu0 0
          %1454 = vmatprep.subr.bf16.mxu0 0
          %1455 = vmatpush1.bf16.msra.mxu0 0
          %1456 = vmatprep.subr.bf16.mxu0 0
          %1457 = vmatpush1.bf16.msra.mxu0 0
          %1458 = vmatprep.subr.bf16.mxu0 0
          %1459 = vmatpush1.bf16.msra.mxu0 0
          %1460 = vmatprep.subr.bf16.mxu0 0
          %1461 = vmatpush1.bf16.msra.mxu0 0
          %1462 = vmatprep.mubr.bf16.mxu0 0
          %1463 = vmatmul.mubr.bf16.gmra.mrb[0].mxu0 %v1346
          %v1464 = vpop.f32.mrb[0].mxu0
          %v1465 = vadd.f32 %v1288, %v1464
          %v1466 = vpop.f32.mrb[0].mxu0
          %v1467 = vadd.f32 %v1288, %v1466
          %v1468 = vpop.f32.mrb[0].mxu0
          %v1469 = vadd.f32 %v1293, %v1468
          %v1470 = vpop.f32.mrb[0].mxu0
          %v1471 = vadd.f32 %v1293, %v1470
          %1472 = vmatprep.mubr.bf16.mxu0 0
          %1473 = vmatmul.mubr.bf16.gmra.mrb[0].mxu0 %v1349
          %v1474 = vpop.f32.mrb[0].mxu0
          %v1475 = vadd.f32 %v1298, %v1474
          %v1476 = vpop.f32.mrb[0].mxu0
          %v1477 = vadd.f32 %v1298, %v1476
          %v1478 = vpop.f32.mrb[0].mxu0
          %v1479 = vadd.f32 %v1303, %v1478
          %v1480 = vpop.f32.mrb[0].mxu0
          %v1481 = vadd.f32 %v1303, %v1480
          %1482 = vmatprep.mubr.bf16.mxu0 0
          %1483 = vmatmul.mubr.bf16.gmra.mrb[0].mxu0 %v1352
          %v1484 = vpop.f32.mrb[0].mxu0
          %v1485 = vadd.f32 %v1308, %v1484
          %v1486 = vpop.f32.mrb[0].mxu0
          %v1487 = vadd.f32 %v1308, %v1486
          %v1488 = vpop.f32.mrb[0].mxu0
          %v1489 = vadd.f32 %v1313, %v1488
          %v1490 = vpop.f32.mrb[0].mxu0
          %v1491 = vadd.f32 %v1313, %v1490
          %1492 = vmatprep.mubr.bf16.mxu0 0
          %1493 = vmatmul.mubr.bf16.gmra.mrb[0].mxu0 %v1355
          %v1494 = vpop.f32.mrb[0].mxu0
          %v1495 = vadd.f32 %v1318, %v1494
          %v1496 = vpop.f32.mrb[0].mxu0
          %v1497 = vadd.f32 %v1318, %v1496
          %v1498 = vpop.f32.mrb[0].mxu0
          %v1499 = vadd.f32 %v1323, %v1498
          %v1500 = vpop.f32.mrb[0].mxu0
          %v1501 = vadd.f32 %v1323, %v1500
          %1502 = vdwg.mxu0
          %v1503 = vmax.f32 %v1392, 0.0
          %v1504 = vmax.f32 %v1394, 0.0
          %v1505 = vmax.f32 %v1465, 0.0
          %v1506 = vmax.f32 %v1467, 0.0
          %v1507 = vmax.f32 %v1396, 0.0
          %v1508 = vmax.f32 %v1398, 0.0
          %v1509 = vmax.f32 %v1469, 0.0
          %v1510 = vmax.f32 %v1471, 0.0
          %v1511 = vmax.f32 %v1402, 0.0
          %v1512 = vmax.f32 %v1404, 0.0
          %v1513 = vmax.f32 %v1475, 0.0
          %v1514 = vmax.f32 %v1477, 0.0
          %v1515 = vmax.f32 %v1406, 0.0
          %v1516 = vmax.f32 %v1408, 0.0
          %v1517 = vmax.f32 %v1479, 0.0
          %v1518 = vmax.f32 %v1481, 0.0
          %v1519 = vmax.f32 %v1412, 0.0
          %v1520 = vmax.f32 %v1414, 0.0
          %v1521 = vmax.f32 %v1485, 0.0
          %v1522 = vmax.f32 %v1487, 0.0
          %v1523 = vmax.f32 %v1416, 0.0
          %v1524 = vmax.f32 %v1418, 0.0
          %v1525 = vmax.f32 %v1489, 0.0
          %v1526 = vmax.f32 %v1491, 0.0
          %v1527 = vmax.f32 %v1422, 0.0
          %v1528 = vmax.f32 %v1424, 0.0
          %v1529 = vmax.f32 %v1495, 0.0
          %v1530 = vmax.f32 %v1497, 0.0
          %v1531 = vmax.f32 %v1426, 0.0
          %v1532 = vmax.f32 %v1428, 0.0
          %v1533 = vmax.f32 %v1499, 0.0
          %v1534 = vmax.f32 %v1501, 0.0
          %v1535 = vpack.c.bf16 %v1507, %v1503
          %v1536 = vpack.c.bf16 %v1508, %v1504
          %v1537 = vpack.c.bf16 %v1509, %v1505
          %v1538 = vpack.c.bf16 %v1510, %v1506
          %v1539 = vpack.c.bf16 %v1515, %v1511
          %v1540 = vpack.c.bf16 %v1516, %v1512
          %v1541 = vpack.c.bf16 %v1517, %v1513
          %v1542 = vpack.c.bf16 %v1518, %v1514
          %v1543 = vpack.c.bf16 %v1523, %v1519
          %v1544 = vpack.c.bf16 %v1524, %v1520
          %v1545 = vpack.c.bf16 %v1525, %v1521
          %v1546 = vpack.c.bf16 %v1526, %v1522
          %v1547 = vpack.c.bf16 %v1531, %v1527
          %v1548 = vpack.c.bf16 %v1532, %v1528
          %v1549 = vpack.c.bf16 %v1533, %v1529
          %v1550 = vpack.c.bf16 %v1534, %v1530
          %v1551 = vld [vmem:[%s5] sm:$0xf]
          %v1552 = vld [vmem:[%s5 + $0x4] sm:$0xf]
          %v1553 = vld [vmem:[%s5 + $0x8] sm:$0xf]
          %v1554 = vld [vmem:[%s5 + $0xc] sm:$0xf]
          %v1555 = vld [vmem:[%s5 + $0x10] sm:$0xf]
          %v1556 = vld [vmem:[%s5 + $0x14] sm:$0xf]
          %v1557 = vld [vmem:[%s5 + $0x18] sm:$0xf]
          %v1558 = vld [vmem:[%s5 + $0x1c] sm:$0xf]
          %v1559 = vld [vmem:[%s5 + $0x20] sm:$0xf]
          %v1560 = vld [vmem:[%s5 + $0x24] sm:$0xf]
          %v1561 = vld [vmem:[%s5 + $0x28] sm:$0xf]
          %v1562 = vld [vmem:[%s5 + $0x2c] sm:$0xf]
          %v1563 = vld [vmem:[%s5 + $0x30] sm:$0xf]
          %v1564 = vld [vmem:[%s5 + $0x34] sm:$0xf]
          %v1565 = vld [vmem:[%s5 + $0x38] sm:$0xf]
          %v1566 = vld [vmem:[%s5 + $0x3c] sm:$0xf]
          %v1567 = vld [vmem:[%s10] sm:$0xff]
          %v1568 = vld [vmem:[%s10 + $0x8] sm:$0xff]
          %v1569 = vld [vmem:[%s10 + $0x10] sm:$0xff]
          %v1570 = vld [vmem:[%s10 + $0x18] sm:$0xff]
          %v1571 = vld [vmem:[%s10 + $0x20] sm:$0xff]
          %v1572 = vld [vmem:[%s10 + $0x28] sm:$0xff]
          %v1573 = vld [vmem:[%s10 + $0x30] sm:$0xff]
          %v1574 = vld [vmem:[%s10 + $0x38] sm:$0xff]
          %v1575 = vld [vmem:[%s10 + $0x40] sm:$0xff]
          %v1576 = vld [vmem:[%s10 + $0x48] sm:$0xff]
          %v1577 = vld [vmem:[%s10 + $0x50] sm:$0xff]
          %v1578 = vld [vmem:[%s10 + $0x58] sm:$0xff]
          %v1579 = vld [vmem:[%s10 + $0x60] sm:$0xff]
          %v1580 = vld [vmem:[%s10 + $0x68] sm:$0xff]
          %v1581 = vld [vmem:[%s10 + $0x70] sm:$0xff]
          %v1582 = vld [vmem:[%s10 + $0x78] sm:$0xff]
          %1584 = vset.pattern.permute.xlu0 0
          %1585 = vperm.xlu0 %1584, %v1567
          %v1586 = vpop.permute.xlu0 %1585
          %1589 = vset.pattern.permute.xlu0 0
          %1590 = vperm.xlu0 %1589, %v1568
          %v1591 = vpop.permute.xlu0 %1590
          %1594 = vset.pattern.permute.xlu0 0
          %1595 = vperm.xlu0 %1594, %v1569
          %v1596 = vpop.permute.xlu0 %1595
          %1599 = vset.pattern.permute.xlu0 0
          %1600 = vperm.xlu0 %1599, %v1570
          %v1601 = vpop.permute.xlu0 %1600
          %1604 = vset.pattern.permute.xlu0 0
          %1605 = vperm.xlu0 %1604, %v1571
          %v1606 = vpop.permute.xlu0 %1605
          %1609 = vset.pattern.permute.xlu0 0
          %1610 = vperm.xlu0 %1609, %v1572
          %v1611 = vpop.permute.xlu0 %1610
          %1614 = vset.pattern.permute.xlu0 0
          %1615 = vperm.xlu0 %1614, %v1573
          %v1616 = vpop.permute.xlu0 %1615
          %1619 = vset.pattern.permute.xlu0 0
          %1620 = vperm.xlu0 %1619, %v1574
          %v1621 = vpop.permute.xlu0 %1620
          %1624 = vset.pattern.permute.xlu0 0
          %1625 = vperm.xlu0 %1624, %v1575
          %v1626 = vpop.permute.xlu0 %1625
          %1629 = vset.pattern.permute.xlu0 0
          %1630 = vperm.xlu0 %1629, %v1576
          %v1631 = vpop.permute.xlu0 %1630
          %1634 = vset.pattern.permute.xlu0 0
          %1635 = vperm.xlu0 %1634, %v1577
          %v1636 = vpop.permute.xlu0 %1635
          %1639 = vset.pattern.permute.xlu0 0
          %1640 = vperm.xlu0 %1639, %v1578
          %v1641 = vpop.permute.xlu0 %1640
          %1644 = vset.pattern.permute.xlu0 0
          %1645 = vperm.xlu0 %1644, %v1579
          %v1646 = vpop.permute.xlu0 %1645
          %1649 = vset.pattern.permute.xlu0 0
          %1650 = vperm.xlu0 %1649, %v1580
          %v1651 = vpop.permute.xlu0 %1650
          %1654 = vset.pattern.permute.xlu0 0
          %1655 = vperm.xlu0 %1654, %v1581
          %v1656 = vpop.permute.xlu0 %1655
          %1659 = vset.pattern.permute.xlu0 0
          %1660 = vperm.xlu0 %1659, %v1582
          %v1661 = vpop.permute.xlu0 %1660
          %v1679 = vunpack.c.l.b16 %v1551
          %v1680 = vunpack.c.l.b16 %v1552
          %v1681 = vunpack.c.l.b16 %v1553
          %v1682 = vunpack.c.l.b16 %v1554
          %v1683 = vunpack.c.l.b16 %v1555
          %v1684 = vunpack.c.l.b16 %v1556
          %v1685 = vunpack.c.l.b16 %v1557
          %v1686 = vunpack.c.l.b16 %v1558
          %v1687 = vunpack.c.l.b16 %v1559
          %v1688 = vunpack.c.l.b16 %v1560
          %v1689 = vunpack.c.l.b16 %v1561
          %v1690 = vunpack.c.l.b16 %v1562
          %v1691 = vunpack.c.l.b16 %v1563
          %v1692 = vunpack.c.l.b16 %v1564
          %v1693 = vunpack.c.l.b16 %v1565
          %v1694 = vunpack.c.l.b16 %v1566
          %v1695 = vpack.c.b16 %v1680, %v1679
          %v1696 = vpack.c.b16 %v1682, %v1681
          %v1697 = vpack.c.b16 %v1684, %v1683
          %v1698 = vpack.c.b16 %v1686, %v1685
          %v1699 = vpack.c.b16 %v1688, %v1687
          %v1700 = vpack.c.b16 %v1690, %v1689
          %v1701 = vpack.c.b16 %v1692, %v1691
          %v1702 = vpack.c.b16 %v1694, %v1693
          %v1704 = vsel %vm1062, %v1695, 0
          %v1707 = vsel %vm1062, %v1696, 0
          %v1710 = vsel %vm1062, %v1697, 0
          %v1713 = vsel %vm1062, %v1698, 0
          %v1716 = vsel %vm1062, %v1699, 0
          %v1719 = vsel %vm1062, %v1700, 0
          %v1722 = vsel %vm1062, %v1701, 0
          %v1725 = vsel %vm1062, %v1702, 0
          %1727 = vmatprep.subr.bf16.mxu0 %v1536
          %1728 = vmatpush1.bf16.msra.mxu0 %v1535
          %1729 = vmatprep.subr.bf16.mxu0 %v1540
          %1730 = vmatpush1.bf16.msra.mxu0 %v1539
          %1731 = vmatprep.subr.bf16.mxu0 %v1544
          %1732 = vmatpush1.bf16.msra.mxu0 %v1543
          %1733 = vmatprep.subr.bf16.mxu0 %v1548
          %1734 = vmatpush1.bf16.msra.mxu0 %v1547
          %1735 = vmatprep.subr.bf16.mxu0 0
          %1736 = vmatpush1.bf16.msra.mxu0 0
          %1737 = vmatprep.subr.bf16.mxu0 0
          %1738 = vmatpush1.bf16.msra.mxu0 0
          %1739 = vmatprep.subr.bf16.mxu0 0
          %1740 = vmatpush1.bf16.msra.mxu0 0
          %1741 = vmatprep.subr.bf16.mxu0 0
          %1742 = vmatpush1.bf16.msra.mxu0 0
          %1743 = vmatprep.subr.bf16.mxu0 0
          %1744 = vmatpush1.bf16.msra.mxu0 0
          %1745 = vmatprep.subr.bf16.mxu0 0
          %1746 = vmatpush1.bf16.msra.mxu0 0
          %1747 = vmatprep.subr.bf16.mxu0 0
          %1748 = vmatpush1.bf16.msra.mxu0 0
          %1749 = vmatprep.subr.bf16.mxu0 0
          %1750 = vmatpush1.bf16.msra.mxu0 0
          %1751 = vmatprep.subr.bf16.mxu0 0
          %1752 = vmatpush1.bf16.msra.mxu0 0
          %1753 = vmatprep.subr.bf16.mxu0 0
          %1754 = vmatpush1.bf16.msra.mxu0 0
          %1755 = vmatprep.subr.bf16.mxu0 0
          %1756 = vmatpush1.bf16.msra.mxu0 0
          %1757 = vmatprep.subr.bf16.mxu0 0
          %1758 = vmatpush1.bf16.msra.mxu0 0
          %1759 = vmatprep.mubr.bf16.mxu0 0
          %1760 = vmatmul.mubr.bf16.gmra.mrb[0].mxu0 %v1704
          %v1761 = vpop.f32.mrb[0].mxu0
          %v1762 = vadd.f32 %v1586, %v1761
          %v1763 = vpop.f32.mrb[0].mxu0
          %v1764 = vadd.f32 %v1586, %v1763
          %v1765 = vpop.f32.mrb[0].mxu0
          %v1766 = vadd.f32 %v1591, %v1765
          %v1767 = vpop.f32.mrb[0].mxu0
          %v1768 = vadd.f32 %v1591, %v1767
          %1769 = vmatprep.mubr.bf16.mxu0 0
          %1770 = vmatmul.mubr.bf16.gmra.mrb[0].mxu0 %v1707
          %v1771 = vpop.f32.mrb[0].mxu0
          %v1772 = vadd.f32 %v1596, %v1771
          %v1773 = vpop.f32.mrb[0].mxu0
          %v1774 = vadd.f32 %v1596, %v1773
          %v1775 = vpop.f32.mrb[0].mxu0
          %v1776 = vadd.f32 %v1601, %v1775
          %v1777 = vpop.f32.mrb[0].mxu0
          %v1778 = vadd.f32 %v1601, %v1777
          %1779 = vmatprep.mubr.bf16.mxu0 0
          %1780 = vmatmul.mubr.bf16.gmra.mrb[0].mxu0 %v1710
          %v1781 = vpop.f32.mrb[0].mxu0
          %v1782 = vadd.f32 %v1606, %v1781
          %v1783 = vpop.f32.mrb[0].mxu0
          %v1784 = vadd.f32 %v1606, %v1783
          %v1785 = vpop.f32.mrb[0].mxu0
          %v1786 = vadd.f32 %v1611, %v1785
          %v1787 = vpop.f32.mrb[0].mxu0
          %v1788 = vadd.f32 %v1611, %v1787
          %1789 = vmatprep.mubr.bf16.mxu0 0
          %1790 = vmatmul.mubr.bf16.gmra.mrb[0].mxu0 %v1713
          %v1791 = vpop.f32.mrb[0].mxu0
          %v1792 = vadd.f32 %v1616, %v1791
          %v1793 = vpop.f32.mrb[0].mxu0
          %v1794 = vadd.f32 %v1616, %v1793
          %v1795 = vpop.f32.mrb[0].mxu0
          %v1796 = vadd.f32 %v1621, %v1795
          %v1797 = vpop.f32.mrb[0].mxu0
          %v1798 = vadd.f32 %v1621, %v1797
          %1799 = vmatprep.mubr.bf16.mxu0 0
          %1800 = vmatmul.mubr.bf16.gmra.mrb[0].mxu0 %v1716
          %v1801 = vpop.f32.mrb[0].mxu0
          %v1802 = vadd.f32 %v1626, %v1801
          %v1803 = vpop.f32.mrb[0].mxu0
          %v1804 = vadd.f32 %v1626, %v1803
          %v1805 = vpop.f32.mrb[0].mxu0
          %v1806 = vadd.f32 %v1631, %v1805
          %v1807 = vpop.f32.mrb[0].mxu0
          %v1808 = vadd.f32 %v1631, %v1807
          %1809 = vmatprep.mubr.bf16.mxu0 0
          %1810 = vmatmul.mubr.bf16.gmra.mrb[0].mxu0 %v1719
          %v1811 = vpop.f32.mrb[0].mxu0
          %v1812 = vadd.f32 %v1636, %v1811
          %v1813 = vpop.f32.mrb[0].mxu0
          %v1814 = vadd.f32 %v1636, %v1813
          %v1815 = vpop.f32.mrb[0].mxu0
          %v1816 = vadd.f32 %v1641, %v1815
          %v1817 = vpop.f32.mrb[0].mxu0
          %v1818 = vadd.f32 %v1641, %v1817
          %1819 = vmatprep.mubr.bf16.mxu0 0
          %1820 = vmatmul.mubr.bf16.gmra.mrb[0].mxu0 %v1722
          %v1821 = vpop.f32.mrb[0].mxu0
          %v1822 = vadd.f32 %v1646, %v1821
          %v1823 = vpop.f32.mrb[0].mxu0
          %v1824 = vadd.f32 %v1646, %v1823
          %v1825 = vpop.f32.mrb[0].mxu0
          %v1826 = vadd.f32 %v1651, %v1825
          %v1827 = vpop.f32.mrb[0].mxu0
          %v1828 = vadd.f32 %v1651, %v1827
          %1829 = vmatprep.mubr.bf16.mxu0 0
          %1830 = vmatmul.mubr.bf16.gmra.mrb[0].mxu0 %v1725
          %v1831 = vpop.f32.mrb[0].mxu0
          %v1832 = vadd.f32 %v1656, %v1831
          %v1833 = vpop.f32.mrb[0].mxu0
          %v1834 = vadd.f32 %v1656, %v1833
          %v1835 = vpop.f32.mrb[0].mxu0
          %v1836 = vadd.f32 %v1661, %v1835
          %v1837 = vpop.f32.mrb[0].mxu0
          %v1838 = vadd.f32 %v1661, %v1837
          %1839 = vdwg.mxu0
          %1840 = vmatprep.subr.bf16.mxu0 %v1538
          %1841 = vmatpush1.bf16.msra.mxu0 %v1537
          %1842 = vmatprep.subr.bf16.mxu0 %v1542
          %1843 = vmatpush1.bf16.msra.mxu0 %v1541
          %1844 = vmatprep.subr.bf16.mxu0 %v1546
          %1845 = vmatpush1.bf16.msra.mxu0 %v1545
          %1846 = vmatprep.subr.bf16.mxu0 %v1550
          %1847 = vmatpush1.bf16.msra.mxu0 %v1549
          %1848 = vmatprep.subr.bf16.mxu0 0
          %1849 = vmatpush1.bf16.msra.mxu0 0
          %1850 = vmatprep.subr.bf16.mxu0 0
          %1851 = vmatpush1.bf16.msra.mxu0 0
          %1852 = vmatprep.subr.bf16.mxu0 0
          %1853 = vmatpush1.bf16.msra.mxu0 0
          %1854 = vmatprep.subr.bf16.mxu0 0
          %1855 = vmatpush1.bf16.msra.mxu0 0
          %1856 = vmatprep.subr.bf16.mxu0 0
          %1857 = vmatpush1.bf16.msra.mxu0 0
          %1858 = vmatprep.subr.bf16.mxu0 0
          %1859 = vmatpush1.bf16.msra.mxu0 0
          %1860 = vmatprep.subr.bf16.mxu0 0
          %1861 = vmatpush1.bf16.msra.mxu0 0
          %1862 = vmatprep.subr.bf16.mxu0 0
          %1863 = vmatpush1.bf16.msra.mxu0 0
          %1864 = vmatprep.subr.bf16.mxu0 0
          %1865 = vmatpush1.bf16.msra.mxu0 0
          %1866 = vmatprep.subr.bf16.mxu0 0
          %1867 = vmatpush1.bf16.msra.mxu0 0
          %1868 = vmatprep.subr.bf16.mxu0 0
          %1869 = vmatpush1.bf16.msra.mxu0 0
          %1870 = vmatprep.subr.bf16.mxu0 0
          %1871 = vmatpush1.bf16.msra.mxu0 0
          %1872 = vmatprep.mubr.bf16.mxu0 0
          %1873 = vmatmul.mubr.bf16.gmra.mrb[0].mxu0 %v1704
          %v1874 = vpop.f32.mrb[0].mxu0
          %v1875 = vadd.f32 %v1586, %v1874
          %v1876 = vpop.f32.mrb[0].mxu0
          %v1877 = vadd.f32 %v1586, %v1876
          %v1878 = vpop.f32.mrb[0].mxu0
          %v1879 = vadd.f32 %v1591, %v1878
          %v1880 = vpop.f32.mrb[0].mxu0
          %v1881 = vadd.f32 %v1591, %v1880
          %1882 = vmatprep.mubr.bf16.mxu0 0
          %1883 = vmatmul.mubr.bf16.gmra.mrb[0].mxu0 %v1707
          %v1884 = vpop.f32.mrb[0].mxu0
          %v1885 = vadd.f32 %v1596, %v1884
          %v1886 = vpop.f32.mrb[0].mxu0
          %v1887 = vadd.f32 %v1596, %v1886
          %v1888 = vpop.f32.mrb[0].mxu0
          %v1889 = vadd.f32 %v1601, %v1888
          %v1890 = vpop.f32.mrb[0].mxu0
          %v1891 = vadd.f32 %v1601, %v1890
          %1892 = vmatprep.mubr.bf16.mxu0 0
          %1893 = vmatmul.mubr.bf16.gmra.mrb[0].mxu0 %v1710
          %v1894 = vpop.f32.mrb[0].mxu0
          %v1895 = vadd.f32 %v1606, %v1894
          %v1896 = vpop.f32.mrb[0].mxu0
          %v1897 = vadd.f32 %v1606, %v1896
          %v1898 = vpop.f32.mrb[0].mxu0
          %v1899 = vadd.f32 %v1611, %v1898
          %v1900 = vpop.f32.mrb[0].mxu0
          %v1901 = vadd.f32 %v1611, %v1900
          %1902 = vmatprep.mubr.bf16.mxu0 0
          %1903 = vmatmul.mubr.bf16.gmra.mrb[0].mxu0 %v1713
          %v1904 = vpop.f32.mrb[0].mxu0
          %v1905 = vadd.f32 %v1616, %v1904
          %v1906 = vpop.f32.mrb[0].mxu0
          %v1907 = vadd.f32 %v1616, %v1906
          %v1908 = vpop.f32.mrb[0].mxu0
          %v1909 = vadd.f32 %v1621, %v1908
          %v1910 = vpop.f32.mrb[0].mxu0
          %v1911 = vadd.f32 %v1621, %v1910
          %1912 = vmatprep.mubr.bf16.mxu0 0
          %1913 = vmatmul.mubr.bf16.gmra.mrb[0].mxu0 %v1716
          %v1914 = vpop.f32.mrb[0].mxu0
          %v1915 = vadd.f32 %v1626, %v1914
          %v1916 = vpop.f32.mrb[0].mxu0
          %v1917 = vadd.f32 %v1626, %v1916
          %v1918 = vpop.f32.mrb[0].mxu0
          %v1919 = vadd.f32 %v1631, %v1918
          %v1920 = vpop.f32.mrb[0].mxu0
          %v1921 = vadd.f32 %v1631, %v1920
          %1922 = vmatprep.mubr.bf16.mxu0 0
          %1923 = vmatmul.mubr.bf16.gmra.mrb[0].mxu0 %v1719
          %v1924 = vpop.f32.mrb[0].mxu0
          %v1925 = vadd.f32 %v1636, %v1924
          %v1926 = vpop.f32.mrb[0].mxu0
          %v1927 = vadd.f32 %v1636, %v1926
          %v1928 = vpop.f32.mrb[0].mxu0
          %v1929 = vadd.f32 %v1641, %v1928
          %v1930 = vpop.f32.mrb[0].mxu0
          %v1931 = vadd.f32 %v1641, %v1930
          %1932 = vmatprep.mubr.bf16.mxu0 0
          %1933 = vmatmul.mubr.bf16.gmra.mrb[0].mxu0 %v1722
          %v1934 = vpop.f32.mrb[0].mxu0
          %v1935 = vadd.f32 %v1646, %v1934
          %v1936 = vpop.f32.mrb[0].mxu0
          %v1937 = vadd.f32 %v1646, %v1936
          %v1938 = vpop.f32.mrb[0].mxu0
          %v1939 = vadd.f32 %v1651, %v1938
          %v1940 = vpop.f32.mrb[0].mxu0
          %v1941 = vadd.f32 %v1651, %v1940
          %1942 = vmatprep.mubr.bf16.mxu0 0
          %1943 = vmatmul.mubr.bf16.gmra.mrb[0].mxu0 %v1725
          %v1944 = vpop.f32.mrb[0].mxu0
          %v1945 = vadd.f32 %v1656, %v1944
          %v1946 = vpop.f32.mrb[0].mxu0
          %v1947 = vadd.f32 %v1656, %v1946
          %v1948 = vpop.f32.mrb[0].mxu0
          %v1949 = vadd.f32 %v1661, %v1948
          %v1950 = vpop.f32.mrb[0].mxu0
          %v1951 = vadd.f32 %v1661, %v1950
          %1952 = vdwg.mxu0
          %v1953 = vmax.f32 %v1762, 0.0
          %v1954 = vmax.f32 %v1764, 0.0
          %v1955 = vmax.f32 %v1875, 0.0
          %v1956 = vmax.f32 %v1877, 0.0
          %v1957 = vmax.f32 %v1766, 0.0
          %v1958 = vmax.f32 %v1768, 0.0
          %v1959 = vmax.f32 %v1879, 0.0
          %v1960 = vmax.f32 %v1881, 0.0
          %v1961 = vmax.f32 %v1772, 0.0
          %v1962 = vmax.f32 %v1774, 0.0
          %v1963 = vmax.f32 %v1885, 0.0
          %v1964 = vmax.f32 %v1887, 0.0
          %v1965 = vmax.f32 %v1776, 0.0
          %v1966 = vmax.f32 %v1778, 0.0
          %v1967 = vmax.f32 %v1889, 0.0
          %v1968 = vmax.f32 %v1891, 0.0
          %v1969 = vmax.f32 %v1782, 0.0
          %v1970 = vmax.f32 %v1784, 0.0
          %v1971 = vmax.f32 %v1895, 0.0
          %v1972 = vmax.f32 %v1897, 0.0
          %v1973 = vmax.f32 %v1786, 0.0
          %v1974 = vmax.f32 %v1788, 0.0
          %v1975 = vmax.f32 %v1899, 0.0
          %v1976 = vmax.f32 %v1901, 0.0
          %v1977 = vmax.f32 %v1792, 0.0
          %v1978 = vmax.f32 %v1794, 0.0
          %v1979 = vmax.f32 %v1905, 0.0
          %v1980 = vmax.f32 %v1907, 0.0
          %v1981 = vmax.f32 %v1796, 0.0
          %v1982 = vmax.f32 %v1798, 0.0
          %v1983 = vmax.f32 %v1909, 0.0
          %v1984 = vmax.f32 %v1911, 0.0
          %v1985 = vmax.f32 %v1802, 0.0
          %v1986 = vmax.f32 %v1804, 0.0
          %v1987 = vmax.f32 %v1915, 0.0
          %v1988 = vmax.f32 %v1917, 0.0
          %v1989 = vmax.f32 %v1806, 0.0
          %v1990 = vmax.f32 %v1808, 0.0
          %v1991 = vmax.f32 %v1919, 0.0
          %v1992 = vmax.f32 %v1921, 0.0
          %v1993 = vmax.f32 %v1812, 0.0
          %v1994 = vmax.f32 %v1814, 0.0
          %v1995 = vmax.f32 %v1925, 0.0
          %v1996 = vmax.f32 %v1927, 0.0
          %v1997 = vmax.f32 %v1816, 0.0
          %v1998 = vmax.f32 %v1818, 0.0
          %v1999 = vmax.f32 %v1929, 0.0
          %v2000 = vmax.f32 %v1931, 0.0
          %v2001 = vmax.f32 %v1822, 0.0
          %v2002 = vmax.f32 %v1824, 0.0
          %v2003 = vmax.f32 %v1935, 0.0
          %v2004 = vmax.f32 %v1937, 0.0
          %v2005 = vmax.f32 %v1826, 0.0
          %v2006 = vmax.f32 %v1828, 0.0
          %v2007 = vmax.f32 %v1939, 0.0
          %v2008 = vmax.f32 %v1941, 0.0
          %v2009 = vmax.f32 %v1832, 0.0
          %v2010 = vmax.f32 %v1834, 0.0
          %v2011 = vmax.f32 %v1945, 0.0
          %v2012 = vmax.f32 %v1947, 0.0
          %v2013 = vmax.f32 %v1836, 0.0
          %v2014 = vmax.f32 %v1838, 0.0
          %v2015 = vmax.f32 %v1949, 0.0
          %v2016 = vmax.f32 %v1951, 0.0
          %v2017 = vpack.c.bf16 %v1957, %v1953
          %v2018 = vpack.c.bf16 %v1958, %v1954
          %v2019 = vpack.c.bf16 %v1959, %v1955
          %v2020 = vpack.c.bf16 %v1960, %v1956
          %v2021 = vpack.c.bf16 %v1965, %v1961
          %v2022 = vpack.c.bf16 %v1966, %v1962
          %v2023 = vpack.c.bf16 %v1967, %v1963
          %v2024 = vpack.c.bf16 %v1968, %v1964
          %v2025 = vpack.c.bf16 %v1973, %v1969
          %v2026 = vpack.c.bf16 %v1974, %v1970
          %v2027 = vpack.c.bf16 %v1975, %v1971
          %v2028 = vpack.c.bf16 %v1976, %v1972
          %v2029 = vpack.c.bf16 %v1981, %v1977
          %v2030 = vpack.c.bf16 %v1982, %v1978
          %v2031 = vpack.c.bf16 %v1983, %v1979
          %v2032 = vpack.c.bf16 %v1984, %v1980
          %v2033 = vpack.c.bf16 %v1989, %v1985
          %v2034 = vpack.c.bf16 %v1990, %v1986
          %v2035 = vpack.c.bf16 %v1991, %v1987
          %v2036 = vpack.c.bf16 %v1992, %v1988
          %v2037 = vpack.c.bf16 %v1997, %v1993
          %v2038 = vpack.c.bf16 %v1998, %v1994
          %v2039 = vpack.c.bf16 %v1999, %v1995
          %v2040 = vpack.c.bf16 %v2000, %v1996
          %v2041 = vpack.c.bf16 %v2005, %v2001
          %v2042 = vpack.c.bf16 %v2006, %v2002
          %v2043 = vpack.c.bf16 %v2007, %v2003
          %v2044 = vpack.c.bf16 %v2008, %v2004
          %v2045 = vpack.c.bf16 %v2013, %v2009
          %v2046 = vpack.c.bf16 %v2014, %v2010
          %v2047 = vpack.c.bf16 %v2015, %v2011
          %v2048 = vpack.c.bf16 %v2016, %v2012
          %v2049 = vld [vmem:[%s6] sm:$0xf]
          %v2050 = vld [vmem:[%s6 + $0x4] sm:$0xf]
          %v2051 = vld [vmem:[%s6 + $0x8] sm:$0xf]
          %v2052 = vld [vmem:[%s6 + $0xc] sm:$0xf]
          %v2053 = vld [vmem:[%s6 + $0x10] sm:$0xf]
          %v2054 = vld [vmem:[%s6 + $0x14] sm:$0xf]
          %v2055 = vld [vmem:[%s6 + $0x18] sm:$0xf]
          %v2056 = vld [vmem:[%s6 + $0x1c] sm:$0xf]
          %v2057 = vld [vmem:[%s11] sm:$0xff]
          %v2058 = vld [vmem:[%s11 + $0x8] sm:$0xff]
          %v2059 = vld [vmem:[%s11 + $0x10] sm:$0xff]
          %v2060 = vld [vmem:[%s11 + $0x18] sm:$0xff]
          %v2061 = vld [vmem:[%s11 + $0x20] sm:$0xff]
          %v2062 = vld [vmem:[%s11 + $0x28] sm:$0xff]
          %v2063 = vld [vmem:[%s11 + $0x30] sm:$0xff]
          %v2064 = vld [vmem:[%s11 + $0x38] sm:$0xff]
          %2066 = vset.pattern.permute.xlu0 0
          %2067 = vperm.xlu0 %2066, %v2057
          %v2068 = vpop.permute.xlu0 %2067
          %2071 = vset.pattern.permute.xlu0 0
          %2072 = vperm.xlu0 %2071, %v2058
          %v2073 = vpop.permute.xlu0 %2072
          %2076 = vset.pattern.permute.xlu0 0
          %2077 = vperm.xlu0 %2076, %v2059
          %v2078 = vpop.permute.xlu0 %2077
          %2081 = vset.pattern.permute.xlu0 0
          %2082 = vperm.xlu0 %2081, %v2060
          %v2083 = vpop.permute.xlu0 %2082
          %2086 = vset.pattern.permute.xlu0 0
          %2087 = vperm.xlu0 %2086, %v2061
          %v2088 = vpop.permute.xlu0 %2087
          %2091 = vset.pattern.permute.xlu0 0
          %2092 = vperm.xlu0 %2091, %v2062
          %v2093 = vpop.permute.xlu0 %2092
          %2096 = vset.pattern.permute.xlu0 0
          %2097 = vperm.xlu0 %2096, %v2063
          %v2098 = vpop.permute.xlu0 %2097
          %2101 = vset.pattern.permute.xlu0 0
          %2102 = vperm.xlu0 %2101, %v2064
          %v2103 = vpop.permute.xlu0 %2102
          %v2113 = vunpack.c.l.b16 %v2049
          %v2114 = vunpack.c.l.b16 %v2050
          %v2115 = vunpack.c.l.b16 %v2051
          %v2116 = vunpack.c.l.b16 %v2052
          %v2117 = vunpack.c.l.b16 %v2053
          %v2118 = vunpack.c.l.b16 %v2054
          %v2119 = vunpack.c.l.b16 %v2055
          %v2120 = vunpack.c.l.b16 %v2056
          %v2121 = vpack.c.b16 %v2114, %v2113
          %v2122 = vpack.c.b16 %v2116, %v2115
          %v2123 = vpack.c.b16 %v2118, %v2117
          %v2124 = vpack.c.b16 %v2120, %v2119
          %2129 = vmatprep.subr.bf16.mxu0 %v2018
          %2130 = vmatpush1.bf16.msra.mxu0 %v2017
          %2131 = vmatprep.subr.bf16.mxu0 %v2022
          %2132 = vmatpush1.bf16.msra.mxu0 %v2021
          %2133 = vmatprep.subr.bf16.mxu0 %v2026
          %2134 = vmatpush1.bf16.msra.mxu0 %v2025
          %2135 = vmatprep.subr.bf16.mxu0 %v2030
          %2136 = vmatpush1.bf16.msra.mxu0 %v2029
          %2137 = vmatprep.subr.bf16.mxu0 %v2034
          %2138 = vmatpush1.bf16.msra.mxu0 %v2033
          %2139 = vmatprep.subr.bf16.mxu0 %v2038
          %2140 = vmatpush1.bf16.msra.mxu0 %v2037
          %2141 = vmatprep.subr.bf16.mxu0 %v2042
          %2142 = vmatpush1.bf16.msra.mxu0 %v2041
          %2143 = vmatprep.subr.bf16.mxu0 %v2046
          %2144 = vmatpush1.bf16.msra.mxu0 %v2045
          %2145 = vmatprep.subr.bf16.mxu0 0
          %2146 = vmatpush1.bf16.msra.mxu0 0
          %2147 = vmatprep.subr.bf16.mxu0 0
          %2148 = vmatpush1.bf16.msra.mxu0 0
          %2149 = vmatprep.subr.bf16.mxu0 0
          %2150 = vmatpush1.bf16.msra.mxu0 0
          %2151 = vmatprep.subr.bf16.mxu0 0
          %2152 = vmatpush1.bf16.msra.mxu0 0
          %2153 = vmatprep.subr.bf16.mxu0 0
          %2154 = vmatpush1.bf16.msra.mxu0 0
          %2155 = vmatprep.subr.bf16.mxu0 0
          %2156 = vmatpush1.bf16.msra.mxu0 0
          %2157 = vmatprep.subr.bf16.mxu0 0
          %2158 = vmatpush1.bf16.msra.mxu0 0
          %2159 = vmatprep.subr.bf16.mxu0 0
          %2160 = vmatpush1.bf16.msra.mxu0 0
          %2161 = vmatprep.mubr.bf16.mxu0 0
          %2162 = vmatmul.mubr.bf16.gmra.mrb[0].mxu0 %v2121
          %v2163 = vpop.f32.mrb[0].mxu0
          %v2164 = vadd.f32 %v2068, %v2163
          %v2165 = vpop.f32.mrb[0].mxu0
          %v2166 = vadd.f32 %v2068, %v2165
          %v2167 = vpop.f32.mrb[0].mxu0
          %v2168 = vadd.f32 %v2073, %v2167
          %v2169 = vpop.f32.mrb[0].mxu0
          %v2170 = vadd.f32 %v2073, %v2169
          %2171 = vmatprep.mubr.bf16.mxu0 0
          %2172 = vmatmul.mubr.bf16.gmra.mrb[0].mxu0 %v2122
          %v2173 = vpop.f32.mrb[0].mxu0
          %v2174 = vadd.f32 %v2078, %v2173
          %v2175 = vpop.f32.mrb[0].mxu0
          %v2176 = vadd.f32 %v2078, %v2175
          %v2177 = vpop.f32.mrb[0].mxu0
          %v2178 = vadd.f32 %v2083, %v2177
          %v2179 = vpop.f32.mrb[0].mxu0
          %v2180 = vadd.f32 %v2083, %v2179
          %2181 = vmatprep.mubr.bf16.mxu0 0
          %2182 = vmatmul.mubr.bf16.gmra.mrb[0].mxu0 %v2123
          %v2183 = vpop.f32.mrb[0].mxu0
          %v2184 = vadd.f32 %v2088, %v2183
          %v2185 = vpop.f32.mrb[0].mxu0
          %v2186 = vadd.f32 %v2088, %v2185
          %v2187 = vpop.f32.mrb[0].mxu0
          %v2188 = vadd.f32 %v2093, %v2187
          %v2189 = vpop.f32.mrb[0].mxu0
          %v2190 = vadd.f32 %v2093, %v2189
          %2191 = vmatprep.mubr.bf16.mxu0 0
          %2192 = vmatmul.mubr.bf16.gmra.mrb[0].mxu0 %v2124
          %v2193 = vpop.f32.mrb[0].mxu0
          %v2194 = vadd.f32 %v2098, %v2193
          %v2195 = vpop.f32.mrb[0].mxu0
          %v2196 = vadd.f32 %v2098, %v2195
          %v2197 = vpop.f32.mrb[0].mxu0
          %v2198 = vadd.f32 %v2103, %v2197
          %v2199 = vpop.f32.mrb[0].mxu0
          %v2200 = vadd.f32 %v2103, %v2199
          %2201 = vdwg.mxu0
          %2202 = vmatprep.subr.bf16.mxu0 %v2020
          %2203 = vmatpush1.bf16.msra.mxu0 %v2019
          %2204 = vmatprep.subr.bf16.mxu0 %v2024
          %2205 = vmatpush1.bf16.msra.mxu0 %v2023
          %2206 = vmatprep.subr.bf16.mxu0 %v2028
          %2207 = vmatpush1.bf16.msra.mxu0 %v2027
          %2208 = vmatprep.subr.bf16.mxu0 %v2032
          %2209 = vmatpush1.bf16.msra.mxu0 %v2031
          %2210 = vmatprep.subr.bf16.mxu0 %v2036
          %2211 = vmatpush1.bf16.msra.mxu0 %v2035
          %2212 = vmatprep.subr.bf16.mxu0 %v2040
          %2213 = vmatpush1.bf16.msra.mxu0 %v2039
          %2214 = vmatprep.subr.bf16.mxu0 %v2044
          %2215 = vmatpush1.bf16.msra.mxu0 %v2043
          %2216 = vmatprep.subr.bf16.mxu0 %v2048
          %2217 = vmatpush1.bf16.msra.mxu0 %v2047
          %2218 = vmatprep.subr.bf16.mxu0 0
          %2219 = vmatpush1.bf16.msra.mxu0 0
          %2220 = vmatprep.subr.bf16.mxu0 0
          %2221 = vmatpush1.bf16.msra.mxu0 0
          %2222 = vmatprep.subr.bf16.mxu0 0
          %2223 = vmatpush1.bf16.msra.mxu0 0
          %2224 = vmatprep.subr.bf16.mxu0 0
          %2225 = vmatpush1.bf16.msra.mxu0 0
          %2226 = vmatprep.subr.bf16.mxu0 0
          %2227 = vmatpush1.bf16.msra.mxu0 0
          %2228 = vmatprep.subr.bf16.mxu0 0
          %2229 = vmatpush1.bf16.msra.mxu0 0
          %2230 = vmatprep.subr.bf16.mxu0 0
          %2231 = vmatpush1.bf16.msra.mxu0 0
          %2232 = vmatprep.subr.bf16.mxu0 0
          %2233 = vmatpush1.bf16.msra.mxu0 0
          %2234 = vmatprep.mubr.bf16.mxu0 0
          %2235 = vmatmul.mubr.bf16.gmra.mrb[0].mxu0 %v2121
          %v2236 = vpop.f32.mrb[0].mxu0
          %v2237 = vadd.f32 %v2068, %v2236
          %v2238 = vpop.f32.mrb[0].mxu0
          %v2239 = vadd.f32 %v2068, %v2238
          %v2240 = vpop.f32.mrb[0].mxu0
          %v2241 = vadd.f32 %v2073, %v2240
          %v2242 = vpop.f32.mrb[0].mxu0
          %v2243 = vadd.f32 %v2073, %v2242
          %2244 = vmatprep.mubr.bf16.mxu0 0
          %2245 = vmatmul.mubr.bf16.gmra.mrb[0].mxu0 %v2122
          %v2246 = vpop.f32.mrb[0].mxu0
          %v2247 = vadd.f32 %v2078, %v2246
          %v2248 = vpop.f32.mrb[0].mxu0
          %v2249 = vadd.f32 %v2078, %v2248
          %v2250 = vpop.f32.mrb[0].mxu0
          %v2251 = vadd.f32 %v2083, %v2250
          %v2252 = vpop.f32.mrb[0].mxu0
          %v2253 = vadd.f32 %v2083, %v2252
          %2254 = vmatprep.mubr.bf16.mxu0 0
          %2255 = vmatmul.mubr.bf16.gmra.mrb[0].mxu0 %v2123
          %v2256 = vpop.f32.mrb[0].mxu0
          %v2257 = vadd.f32 %v2088, %v2256
          %v2258 = vpop.f32.mrb[0].mxu0
          %v2259 = vadd.f32 %v2088, %v2258
          %v2260 = vpop.f32.mrb[0].mxu0
          %v2261 = vadd.f32 %v2093, %v2260
          %v2262 = vpop.f32.mrb[0].mxu0
          %v2263 = vadd.f32 %v2093, %v2262
          %2264 = vmatprep.mubr.bf16.mxu0 0
          %2265 = vmatmul.mubr.bf16.gmra.mrb[0].mxu0 %v2124
          %v2266 = vpop.f32.mrb[0].mxu0
          %v2267 = vadd.f32 %v2098, %v2266
          %v2268 = vpop.f32.mrb[0].mxu0
          %v2269 = vadd.f32 %v2098, %v2268
          %v2270 = vpop.f32.mrb[0].mxu0
          %v2271 = vadd.f32 %v2103, %v2270
          %v2272 = vpop.f32.mrb[0].mxu0
          %v2273 = vadd.f32 %v2103, %v2272
          %2274 = vdwg.mxu0
          %v2275 = vmax.f32 %v2164, 0.0
          %v2276 = vmax.f32 %v2166, 0.0
          %v2277 = vmax.f32 %v2237, 0.0
          %v2278 = vmax.f32 %v2239, 0.0
          %v2279 = vmax.f32 %v2168, 0.0
          %v2280 = vmax.f32 %v2170, 0.0
          %v2281 = vmax.f32 %v2241, 0.0
          %v2282 = vmax.f32 %v2243, 0.0
          %v2283 = vmax.f32 %v2174, 0.0
          %v2284 = vmax.f32 %v2176, 0.0
          %v2285 = vmax.f32 %v2247, 0.0
          %v2286 = vmax.f32 %v2249, 0.0
          %v2287 = vmax.f32 %v2178, 0.0
          %v2288 = vmax.f32 %v2180, 0.0
          %v2289 = vmax.f32 %v2251, 0.0
          %v2290 = vmax.f32 %v2253, 0.0
          %v2291 = vmax.f32 %v2184, 0.0
          %v2292 = vmax.f32 %v2186, 0.0
          %v2293 = vmax.f32 %v2257, 0.0
          %v2294 = vmax.f32 %v2259, 0.0
          %v2295 = vmax.f32 %v2188, 0.0
          %v2296 = vmax.f32 %v2190, 0.0
          %v2297 = vmax.f32 %v2261, 0.0
          %v2298 = vmax.f32 %v2263, 0.0
          %v2299 = vmax.f32 %v2194, 0.0
          %v2300 = vmax.f32 %v2196, 0.0
          %v2301 = vmax.f32 %v2267, 0.0
          %v2302 = vmax.f32 %v2269, 0.0
          %v2303 = vmax.f32 %v2198, 0.0
          %v2304 = vmax.f32 %v2200, 0.0
          %v2305 = vmax.f32 %v2271, 0.0
          %v2306 = vmax.f32 %v2273, 0.0
          %s2307 = sadd.s32 %s424, 512
          %p2308 = scmp.le.s32.totalorder %s2307, %s425
          // Predicated region
          $region73: #{tpu_custom_call.1} parent=71 // pred_check
            %p2309 = pneg %p2308
          $region74: #{tpu_custom_call.1} parent=71 // pred_check_branch
            %2311 = sbr.rel (%p2309) target = $region76
          $region75: #{tpu_custom_call.1} parent=71 // pred_region
            %2312 = vst [vmem:[%s411] sm:$0xff] %v2275
            %2313 = vst [vmem:[%s411 + $0x8] sm:$0xff] %v2276
            %2314 = vst [vmem:[%s411 + $0x10] sm:$0xff] %v2277
            %2315 = vst [vmem:[%s411 + $0x18] sm:$0xff] %v2278
            %2316 = vst [vmem:[%s411 + $0x20] sm:$0xff] %v2279
            %2317 = vst [vmem:[%s411 + $0x28] sm:$0xff] %v2280
            %2318 = vst [vmem:[%s411 + $0x30] sm:$0xff] %v2281
            %2319 = vst [vmem:[%s411 + $0x38] sm:$0xff] %v2282
            %2320 = vst [vmem:[%s411 + $0x40] sm:$0xff] %v2283
            %2321 = vst [vmem:[%s411 + $0x48] sm:$0xff] %v2284
            %2322 = vst [vmem:[%s411 + $0x50] sm:$0xff] %v2285
            %2323 = vst [vmem:[%s411 + $0x58] sm:$0xff] %v2286
            %2324 = vst [vmem:[%s411 + $0x60] sm:$0xff] %v2287
            %2325 = vst [vmem:[%s411 + $0x68] sm:$0xff] %v2288
            %2326 = vst [vmem:[%s411 + $0x70] sm:$0xff] %v2289
            %2327 = vst [vmem:[%s411 + $0x78] sm:$0xff] %v2290
            %2328 = vst [vmem:[%s411 + $0x80] sm:$0xff] %v2291
            %2329 = vst [vmem:[%s411 + $0x88] sm:$0xff] %v2292
            %2330 = vst [vmem:[%s411 + $0x90] sm:$0xff] %v2293
            %2331 = vst [vmem:[%s411 + $0x98] sm:$0xff] %v2294
            %2332 = vst [vmem:[%s411 + $0xa0] sm:$0xff] %v2295
            %2333 = vst [vmem:[%s411 + $0xa8] sm:$0xff] %v2296
            %2334 = vst [vmem:[%s411 + $0xb0] sm:$0xff] %v2297
            %2335 = vst [vmem:[%s411 + $0xb8] sm:$0xff] %v2298
            %2336 = vst [vmem:[%s411 + $0xc0] sm:$0xff] %v2299
            %2337 = vst [vmem:[%s411 + $0xc8] sm:$0xff] %v2300
            %2338 = vst [vmem:[%s411 + $0xd0] sm:$0xff] %v2301
            %2339 = vst [vmem:[%s411 + $0xd8] sm:$0xff] %v2302
            %2340 = vst [vmem:[%s411 + $0xe0] sm:$0xff] %v2303
            %2341 = vst [vmem:[%s411 + $0xe8] sm:$0xff] %v2304
            %2342 = vst [vmem:[%s411 + $0xf0] sm:$0xff] %v2305
            %2343 = vst [vmem:[%s411 + $0xf8] sm:$0xff] %v2306
          $region76: #{tpu_custom_call.1} parent=71 // pred_fallthru
            _
          %p2344 = scmp.gt.s32.totalorder %s2307, %s425
          // Predicated region
          $region77: #{tpu_custom_call.1} parent=71 // pred_check
            %p2345 = pneg %p2344
          $region78: #{tpu_custom_call.1} parent=71 // pred_check_branch
            %2347 = sbr.rel (%p2345) target = $region80
          $region79: #{tpu_custom_call.1} parent=71 // pred_region
            %v2348 = vlaneseq
            %v2349 = vand.u32 %v2348, 127
            %v2350 = vadd.s32 %v2349, 128
            %v2351 = vadd.s32 %v2349, 256
            %v2352 = vadd.s32 %v2349, 384
            %v2353 = vstv %s424
            %v2354 = vadd.s32 %v2353, %v2349
            %v2355 = vadd.s32 %v2353, %v2350
            %v2356 = vadd.s32 %v2353, %v2351
            %v2357 = vadd.s32 %v2353, %v2352
            %v2358 = vstv %s425
            %vm2359 = vcmp.lt.s32.totalorder %v2354, %v2358
            %vm2360 = vcmp.lt.s32.totalorder %v2355, %v2358
            %vm2361 = vcmp.lt.s32.totalorder %v2356, %v2358
            %vm2362 = vcmp.lt.s32.totalorder %v2357, %v2358
            %v2363 = vsel %vm2359, 1, 0
            %v2364 = vsel %vm2360, 1, 0
            %v2365 = vsel %vm2361, 1, 0
            %v2366 = vsel %vm2362, 1, 0
            %vm2367 = vcmp.eq.s32.totalorder %v2363, 1
            %vm2368 = vcmp.eq.s32.totalorder %v2364, 1
            %vm2369 = vcmp.eq.s32.totalorder %v2365, 1
            %vm2370 = vcmp.eq.s32.totalorder %v2366, 1
            %v2371 = vsel %vm2367, %v2275, 0.0
            %v2372 = vsel %vm2368, %v2276, 0.0
            %v2373 = vsel %vm2369, %v2277, 0.0
            %v2374 = vsel %vm2370, %v2278, 0.0
            %v2375 = vsel %vm2367, %v2279, 0.0
            %v2376 = vsel %vm2368, %v2280, 0.0
            %v2377 = vsel %vm2369, %v2281, 0.0
            %v2378 = vsel %vm2370, %v2282, 0.0
            %v2379 = vsel %vm2367, %v2283, 0.0
            %v2380 = vsel %vm2368, %v2284, 0.0
            %v2381 = vsel %vm2369, %v2285, 0.0
            %v2382 = vsel %vm2370, %v2286, 0.0
            %v2383 = vsel %vm2367, %v2287, 0.0
            %v2384 = vsel %vm2368, %v2288, 0.0
            %v2385 = vsel %vm2369, %v2289, 0.0
            %v2386 = vsel %vm2370, %v2290, 0.0
            %v2387 = vsel %vm2367, %v2291, 0.0
            %v2388 = vsel %vm2368, %v2292, 0.0
            %v2389 = vsel %vm2369, %v2293, 0.0
            %v2390 = vsel %vm2370, %v2294, 0.0
            %v2391 = vsel %vm2367, %v2295, 0.0
            %v2392 = vsel %vm2368, %v2296, 0.0
            %v2393 = vsel %vm2369, %v2297, 0.0
            %v2394 = vsel %vm2370, %v2298, 0.0
            %v2395 = vsel %vm2367, %v2299, 0.0
            %v2396 = vsel %vm2368, %v2300, 0.0
            %v2397 = vsel %vm2369, %v2301, 0.0
            %v2398 = vsel %vm2370, %v2302, 0.0
            %v2399 = vsel %vm2367, %v2303, 0.0
            %v2400 = vsel %vm2368, %v2304, 0.0
            %v2401 = vsel %vm2369, %v2305, 0.0
            %v2402 = vsel %vm2370, %v2306, 0.0
            %2403 = vst [vmem:[%s411] sm:$0xff] %v2371
            %2404 = vst [vmem:[%s411 + $0x8] sm:$0xff] %v2372
            %2405 = vst [vmem:[%s411 + $0x10] sm:$0xff] %v2373
            %2406 = vst [vmem:[%s411 + $0x18] sm:$0xff] %v2374
            %2407 = vst [vmem:[%s411 + $0x20] sm:$0xff] %v2375
            %2408 = vst [vmem:[%s411 + $0x28] sm:$0xff] %v2376
            %2409 = vst [vmem:[%s411 + $0x30] sm:$0xff] %v2377
            %2410 = vst [vmem:[%s411 + $0x38] sm:$0xff] %v2378
            %2411 = vst [vmem:[%s411 + $0x40] sm:$0xff] %v2379
            %2412 = vst [vmem:[%s411 + $0x48] sm:$0xff] %v2380
            %2413 = vst [vmem:[%s411 + $0x50] sm:$0xff] %v2381
            %2414 = vst [vmem:[%s411 + $0x58] sm:$0xff] %v2382
            %2415 = vst [vmem:[%s411 + $0x60] sm:$0xff] %v2383
            %2416 = vst [vmem:[%s411 + $0x68] sm:$0xff] %v2384
            %2417 = vst [vmem:[%s411 + $0x70] sm:$0xff] %v2385
            %2418 = vst [vmem:[%s411 + $0x78] sm:$0xff] %v2386
            %2419 = vst [vmem:[%s411 + $0x80] sm:$0xff] %v2387
            %2420 = vst [vmem:[%s411 + $0x88] sm:$0xff] %v2388
            %2421 = vst [vmem:[%s411 + $0x90] sm:$0xff] %v2389
            %2422 = vst [vmem:[%s411 + $0x98] sm:$0xff] %v2390
            %2423 = vst [vmem:[%s411 + $0xa0] sm:$0xff] %v2391
            %2424 = vst [vmem:[%s411 + $0xa8] sm:$0xff] %v2392
            %2425 = vst [vmem:[%s411 + $0xb0] sm:$0xff] %v2393
            %2426 = vst [vmem:[%s411 + $0xb8] sm:$0xff] %v2394
            %2427 = vst [vmem:[%s411 + $0xc0] sm:$0xff] %v2395
            %2428 = vst [vmem:[%s411 + $0xc8] sm:$0xff] %v2396
            %2429 = vst [vmem:[%s411 + $0xd0] sm:$0xff] %v2397
            %2430 = vst [vmem:[%s411 + $0xd8] sm:$0xff] %v2398
            %2431 = vst [vmem:[%s411 + $0xe0] sm:$0xff] %v2399
            %2432 = vst [vmem:[%s411 + $0xe8] sm:$0xff] %v2400
            %2433 = vst [vmem:[%s411 + $0xf0] sm:$0xff] %v2401
            %2434 = vst [vmem:[%s411 + $0xf8] sm:$0xff] %v2402
          $region80: #{tpu_custom_call.1} parent=71 // pred_fallthru
            _
        $region72: #{tpu_custom_call.1} parent=63 // pred_fallthru
          _
        %s2435 = sand.u32 %s292, 1
        %s2436 = scalar_lea.sflag [#allocation5], %s2435
        %s2437 = sand.u32 %s292, 1
        %s2438 = smul.addr %s2437, 256
        %s2439 = scalar_lea.vmem [#allocation4], %s2438
        // Predicated region
        $region81: #{tpu_custom_call.1} parent=63 // pred_check
          %p2440 = pneg %p302
        $region82: #{tpu_custom_call.1} parent=63 // pred_check_branch
          %2442 = sbr.rel (%p2440) target = $region84
        $region83: #{tpu_custom_call.1} parent=63 // pred_region
          %s2443 = smul.u32 4, %s37
          %s2445 = ssub.s32 4096, 4096
          %2446 = vsyncadd %s2436, %s2445
          %s2447 = smul.addr %s36, 64
          %s2448 = sadd.s32 %s2443, %s2447
          %s2449 = smul.addr %s2448, 128
          %s2450 = scalar_lea.hbm %s12, %s2449
          %s2451 = sshll.u32 %s2439, 4
          %s2452 = int_to_ptr.vmem [resolvable:$true] %s2451
          %2457 = dma.vmem_to_hbm [thread:$0]  %s2452, 4096, %s2450, %s2436, 512, 1024, 32
        $region84: #{tpu_custom_call.1} parent=63 // pred_fallthru
          _
      $region64: #{tpu_custom_call.1} parent=5 // pred_fallthru
        _
      %p2458 = scmp.le.s32.totalorder 2, %s27
      // Predicated region
      $region85: #{tpu_custom_call.1} parent=5 // pred_check
        %p2459 = pneg %p2458
      $region86: #{tpu_custom_call.1} parent=5 // pred_check_branch
        %2461 = sbr.rel (%p2459) target = $region88
      $region87: #{tpu_custom_call.1} parent=5 // pred_region
        %s2462 = ssub.s32 %s27, 2
        // Predicated region
        $region89: #{tpu_custom_call.1} parent=87 // pred_check
          %p2463 = pneg %p308
        $region90: #{tpu_custom_call.1} parent=87 // pred_check_branch
          %2465 = sbr.rel (%p2463) target = $region92
        $region91: #{tpu_custom_call.1} parent=87 // pred_region
          %s2466 = sand.u32 %s293, 1
          %s2467 = scalar_lea.sflag [#allocation5], %s2466
          %s2468 = sand.u32 %s293, 1
          %s2469 = smul.addr %s2468, 256
          %s2470 = scalar_lea.vmem [#allocation4], %s2469
          %2471 = dma.done %s2467, 4096
        $region92: #{tpu_custom_call.1} parent=87 // pred_fallthru
          _
      $region88: #{tpu_custom_call.1} parent=5 // pred_fallthru
        _
    $region6: #{tpu_custom_call.1} parent=1 // loop_footer
      %s31 = sadd.s32 1, %s27
    $region7: #{tpu_custom_call.1} parent=1 // loop_footer_branch
      %26 = sbr.rel target = $region3
    $region8: #{tpu_custom_call.1} parent=1 // loop_exit
      _
    %2472 = vsyncpa [#allocation5], 1
    %s2473 = scalar_lea.sflag [#allocation5], 1
    %2474 = vsyncpa %s2473, 1

</llo_original>
